<compile_context>
chip_gen: v7x
topology: tpu7x:2x2x1
jax: 0.10.0
libtpu: 0.0.40
codegen_flags: <defaults>
</compile_context>

<pallas_src>
import numpy as np
import jax
import jax.numpy as jnp
from jax.experimental import pallas as pl
from jax.experimental.pallas import tpu as pltpu


def _round_up(x: int, m: int) -> int:
    return ((x + m - 1) // m) * m


def _make_stft_bases(filter_length: int):
    """Deterministic re-creation of the buffers built in STFT.__init__."""
    window = np.sqrt(np.hanning(filter_length))                      # default window
    cutoff = int(filter_length / 2 + 1)

    fourier_basis = np.fft.fft(np.eye(filter_length)) * window
    forward_basis = np.vstack(
        [np.real(fourier_basis[:cutoff, :]), np.imag(fourier_basis[:cutoff, :])]
    ).astype(np.float32)                                             # (2C, L)

    inv_fourier_basis = np.fft.fft(np.eye(filter_length))
    inv_fourier_basis = np.vstack(
        [np.real(inv_fourier_basis[:cutoff, :]), np.imag(inv_fourier_basis[:cutoff, :])]
    )
    inverse_basis = np.linalg.pinv(inv_fourier_basis).T              # (2C, L)
    inverse_basis = (inverse_basis * window[None, :]).astype(np.float32)

    return jnp.asarray(forward_basis), jnp.asarray(inverse_basis)


def _make_stft_kernel(hop: int, R: int, block_t: int, mrows: int, T: int):
    """Output-stationary STFT round-trip kernel."""

    def stft_kernel(cur_ref, nxt_ref, g_ref, out_ref, w_ref, f_ref):
        # cur_ref/nxt_ref: (block_t, hop) bf16 -- left-padded signal hop-chunks
        #                  [t0, t0+block_t) and [t0+block_t, t0+2*block_t)
        # g_ref          : (L, L) bf16         -- folded basis G = fwd^T @ inv
        # out_ref        : (block_t, hop) f32  -- output hop-rows [t0, t0+block_t)
        # w_ref          : (2*block_t, hop) bf16 VMEM -- staged chunk window
        # f_ref          : (mrows, L) bf16 VMEM       -- assembled frame tile
        t0 = pl.program_id(1) * block_t

        # Stage the contiguous chunk window (two aligned full-block copies).
        w_ref[pl.ds(0, block_t), :] = cur_ref[...]
        w_ref[pl.ds(block_t, block_t), :] = nxt_ref[...]

        # Frame-validity mask: local frame row p holds global frame f = t0-(R-1)+p;
        # only frames f in [0, T) exist -> padded / out-of-range rows stay exact zero.
        p = jax.lax.broadcasted_iota(jnp.int32, (mrows, 1), 0)
        f = p + (t0 - (R - 1))
        valid = jnp.logical_and(f >= 0, f < T)

        # Assemble frame tile: frame row p, hop-chunk j  <-  window row p + j.
        for j in range(R):
            chunk = w_ref[pl.ds(j, mrows), :]
            f_ref[:, j * hop:(j + 1) * hop] = jnp.where(
                valid, chunk, jnp.zeros_like(chunk))

        # Single fused MXU matmul (bf16 inputs, f32 accumulation).
        yf = jnp.dot(f_ref[...], g_ref[...],
                     preferred_element_type=jnp.float32)             # (mrows, L)

        # Output-stationary overlap-add:
        #   out_row[t0 + r] = sum_j yf[frame t0 + r - j, hop-chunk j]
        # R static register-slice adds (sublane shifts), then ONE lane-dense store.
        acc = yf[R - 1:R - 1 + block_t, 0:hop]
        for j in range(1, R):
            s = R - 1 - j
            acc = acc + yf[s:s + block_t, j * hop:(j + 1) * hop]
        out_ref[...] = acc

    return stft_kernel


def stft_forward(x, forward_basis, inverse_basis, filter_length, hop_length,
                 block_t=None):
    """x: (B, N) float32 -> reconstruction (B, (T-1)*hop + L) float32."""
    B, N = x.shape
    L = int(filter_length)
    hop = int(hop_length)
    assert L % hop == 0, "kernel assumes hop_length divides filter_length"
    assert hop % 128 == 0, "kernel assumes hop_length is a multiple of 128"
    R = L // hop                                   # frames overlapping one hop-row
    T = (N - L) // hop + 1                         # frame count (valid conv1d)
    assert T >= 1, "signal shorter than one frame"
    rows_valid = T + R - 1                         # output hop-rows
    out_len = rows_valid * hop                     # == (T-1)*hop + L

    # Fold the two convolution bases into one (L, L) operator on the host.
    G = (forward_basis.astype(jnp.float32).T
         @ inverse_basis.astype(jnp.float32)).astype(jnp.bfloat16)   # (L, L)

    # ---- tiling ------------------------------------------------------------
    E = _round_up(R - 1, 8)                        # extra frame rows (multiple of 8)
    if block_t is None:
        block_t = 512                              # amortize ~0.35us/step, fill MXU M
    block_t = _round_up(min(block_t, _round_up(rows_valid, 8)), 8)
    # window-fit constraint: (block_t + E) + R - 1 <= 2 * block_t
    block_t = max(block_t, 16, _round_up(E + R - 1, 8))
    mrows = block_t + E                            # frames touching one output block

    n_t = (rows_valid + block_t - 1) // block_t
    rows_pad = n_t * block_t
    NP = (n_t + 1) * block_t                       # chunk count incl. last step's "next"

    # Stream x as hop-chunks (single cast/reshape pass; no R-fold frame gather).
    x_chunks = x[:, :out_len].astype(jnp.bfloat16).reshape(B, rows_valid, hop)
    x_chunks = jnp.pad(x_chunks, ((0, 0), (R - 1, NP - (R - 1) - rows_valid), (0, 0)))

    # ---- VMEM budget (generation aware) -------------------------------------
    need = (2 * 2 * block_t * hop * 2      # cur + nxt, double-buffered, bf16
            + 2 * L * L * 2                # G (worst case: double-buffered)
            + 2 * block_t * hop * 2        # chunk-window scratch
            + mrows * L * 2                # frame-tile scratch
            + mrows * L * 4                # yf f32 intermediate
            + 2 * block_t * hop * 4)       # output block, double-buffered
    try:
        vmem_cap = int(pltpu.get_tpu_info().vmem_capacity_bytes)
    except Exception:
        vmem_cap = 64 * 1024 * 1024        # conservative (v7x per-core)
    vmem_limit = max(32 * 1024 * 1024, 2 * need)
    vmem_limit = int(min(vmem_limit, (3 * vmem_cap) // 4))   # headroom for internals

    kernel = _make_stft_kernel(hop, R, block_t, mrows, T)

    cur_spec = pl.BlockSpec((None, block_t, hop), lambda b, t: (b, t, 0))
    nxt_spec = pl.BlockSpec((None, block_t, hop), lambda b, t: (b, t + 1, 0))
    out_spec = pl.BlockSpec((None, block_t, hop), lambda b, t: (b, t, 0))

    def _build(g_spec):
        return pl.pallas_call(
            kernel,
            out_shape=jax.ShapeDtypeStruct((B, rows_pad, hop), jnp.float32),
            grid=(B, n_t),
            in_specs=[cur_spec, nxt_spec, g_spec],
            out_specs=out_spec,
            scratch_shapes=[pltpu.VMEM((2 * block_t, hop), jnp.bfloat16),
                            pltpu.VMEM((mrows, L), jnp.bfloat16)],
            compiler_params=pltpu.CompilerParams(
                dimension_semantics=("parallel", "parallel"),
                vmem_limit_bytes=vmem_limit,
            ),
        )

    try:
        # G's index_map is constant -> single-buffer it (saves an L*L bf16 buffer).
        g_spec = pl.BlockSpec((L, L), lambda b, t: (0, 0),
                              pipeline_mode=pl.Buffered(1))
        out3d = _build(g_spec)(x_chunks, x_chunks, G)
    except Exception:
        g_spec = pl.BlockSpec((L, L), lambda b, t: (0, 0))
        out3d = _build(g_spec)(x_chunks, x_chunks, G)

    # Trailing trim only (< block_t rows, all exact zeros thanks to in-kernel
    # frame masking); hop-chunk flatten is layout glue.
    out = out3d[:, :rows_valid, :].reshape(B, out_len)
    return out


def stft_forward_reference(x, forward_basis, inverse_basis, filter_length, hop_length):
    """Plain-JAX f32 reference matching the PyTorch semantics."""
    B, N = x.shape
    L = filter_length
    T = (N - L) // hop_length + 1
    out_len = (T - 1) * hop_length + L

    idx = (jnp.arange(T)[:, None] * hop_length) + jnp.arange(L)[None, :]
    frames = jnp.transpose(x[:, idx], (1, 0, 2))                         # (T, B, L)
    spec = jnp.einsum("tbl,cl->tbc", frames, forward_basis)              # (T, B, 2C)
    yf = jnp.einsum("tbc,cl->tbl", spec, inverse_basis)                  # (T, B, L)

    out = jnp.zeros((B, out_len), jnp.float32)
    for t in range(T):
        out = out.at[:, t * hop_length: t * hop_length + L].add(yf[t])
    return out


if __name__ == "__main__":
    key = jax.random.PRNGKey(0)
    configs = [
        # (filter_length, hop_length, batch, num_samples, block_t)
        (256, 128, 2, 1024, None),    # small primary config (T=7, R=2)
        (256, 128, 2, 4224, 16),      # multi output-tile path (n_t=3, masks both ends)
        (1024, 512, 2, 4096, None),   # module defaults at small N (T=7, R=2)
    ]
    for (L, hop, B, N, bt) in configs:
        fwd_basis, inv_basis = _make_stft_bases(L)
        key, sub = jax.random.split(key)
        x = jax.random.normal(sub, (B, N), dtype=jnp.float32)

        out = stft_forward(x, fwd_basis, inv_basis, L, hop, block_t=bt)
        out = jax.block_until_ready(out)

        ref = stft_forward_reference(x, fwd_basis, inv_basis, L, hop)
        ref = jax.block_until_ready(ref)

        T = (N - L) // hop + 1
        out_len = (T - 1) * hop + L
        assert out.shape == (B, out_len), (out.shape, (B, out_len))
        np.testing.assert_allclose(np.asarray(out), np.asarray(ref),
                                   rtol=5e-2, atol=5e-2)

    print("KERNEL_OK")
</pallas_src>

<mosaic_0001>
module attributes {stable_mosaic.version = 11 : i64} {
  func.func @stft_kernel(%arg0: i32, %arg1: i32, %arg2: memref<1x16x128xbf16, #tpu.memory_space<vmem>>, %arg3: memref<1x16x128xbf16, #tpu.memory_space<vmem>>, %arg4: memref<256x256xbf16, #tpu.memory_space<vmem>>, %arg5: memref<1x16x128xf32, #tpu.memory_space<vmem>>, %arg6: memref<32x128xbf16, #tpu.memory_space<vmem>>, %arg7: memref<24x256xbf16, #tpu.memory_space<vmem>>) attributes {dimension_semantics = [#tpu.dimension_semantics<parallel>, #tpu.dimension_semantics<parallel>], iteration_bounds = array<i64: 2, 1>, scalar_prefetch = 0 : i64, scratch_operands = 2 : i64, tpu.core_type = #tpu.core_type<tc>, window_params = [{transform_indices = @transform_0, window_bounds = array<i64: 1, 16, 128>}, {transform_indices = @transform_1, window_bounds = array<i64: 1, 16, 128>}, {pipeline_mode = #tpu.pipeline_mode<synchronous>, transform_indices = @transform_2, window_bounds = array<i64: 256, 256>}, {transform_indices = @transform_3, window_bounds = array<i64: 1, 16, 128>}]} {
    %c16_i32 = arith.constant 16 : i32
    %0 = arith.muli %arg1, %c16_i32 : i32
    %c0 = arith.constant 0 : index
    %c0_0 = arith.constant 0 : index
    %c0_1 = arith.constant 0 : index
    %1 = vector.load %arg2[%c0, %c0_0, %c0_1] : memref<1x16x128xbf16, #tpu.memory_space<vmem>>, vector<1x16x128xbf16>
    %2 = vector.shape_cast %1 : vector<1x16x128xbf16> to vector<16x128xbf16>
    %c0_2 = arith.constant 0 : index
    %c0_3 = arith.constant 0 : index
    %3 = vector.load %arg6[%c0_2, %c0_3] : memref<32x128xbf16, #tpu.memory_space<vmem>>, vector<16x128xbf16>
    tpu.vector_store %arg6[%c0_2, %c0_3], %2 {strides = array<i32>} : memref<32x128xbf16, #tpu.memory_space<vmem>>, vector<16x128xbf16>,
    %c0_4 = arith.constant 0 : index
    %c0_5 = arith.constant 0 : index
    %c0_6 = arith.constant 0 : index
    %4 = vector.load %arg3[%c0_4, %c0_5, %c0_6] : memref<1x16x128xbf16, #tpu.memory_space<vmem>>, vector<1x16x128xbf16>
    %5 = vector.shape_cast %4 : vector<1x16x128xbf16> to vector<16x128xbf16>
    %c16 = arith.constant 16 : index
    %c0_7 = arith.constant 0 : index
    %6 = vector.load %arg6[%c16, %c0_7] : memref<32x128xbf16, #tpu.memory_space<vmem>>, vector<16x128xbf16>
    tpu.vector_store %arg6[%c16, %c0_7], %5 {strides = array<i32>} : memref<32x128xbf16, #tpu.memory_space<vmem>>, vector<16x128xbf16>,
    %7 = tpu.iota {dimensions = array<i32: 0>} : vector<24x1xi32>
    %c1_i32 = arith.constant 1 : i32
    %8 = arith.subi %0, %c1_i32 : i32
    %9 = vector.broadcast %8 : i32 to vector<24x1xi32>
    %10 = arith.addi %7, %9 : vector<24x1xi32>
    %c0_i32 = arith.constant 0 : i32
    %11 = vector.broadcast %c0_i32 : i32 to vector<24x1xi32>
    %12 = arith.cmpi sge, %10, %11 : vector<24x1xi32>
    %c7_i32 = arith.constant 7 : i32
    %13 = vector.broadcast %c7_i32 : i32 to vector<24x1xi32>
    %14 = arith.cmpi slt, %10, %13 : vector<24x1xi32>
    %15 = arith.andi %12, %14 : vector<24x1xi1>
    %c0_8 = arith.constant 0 : index
    %c0_9 = arith.constant 0 : index
    %16 = vector.load %arg6[%c0_8, %c0_9] : memref<32x128xbf16, #tpu.memory_space<vmem>>, vector<24x128xbf16>
    %cst = arith.constant 0.000000e+00 : bf16
    %17 = vector.broadcast %cst : bf16 to vector<24x128xbf16>
    %18 = vector.shape_cast %15 : vector<24x1xi1> to vector<24x1xi1>
    %19 = vector.broadcast %18 : vector<24x1xi1> to vector<24x128xi1>
    %20 = arith.select %19, %16, %17 : vector<24x128xi1>, vector<24x128xbf16>
    %c0_10 = arith.constant 0 : index
    %c0_11 = arith.constant 0 : index
    %21 = vector.load %arg7[%c0_10, %c0_11] : memref<24x256xbf16, #tpu.memory_space<vmem>>, vector<24x128xbf16>
    tpu.vector_store %arg7[%c0_10, %c0_11], %20 {strides = array<i32>} : memref<24x256xbf16, #tpu.memory_space<vmem>>, vector<24x128xbf16>,
    %c1 = arith.constant 1 : index
    %c0_12 = arith.constant 0 : index
    %22 = vector.load %arg6[%c1, %c0_12] : memref<32x128xbf16, #tpu.memory_space<vmem>>, vector<24x128xbf16>
    %cst_13 = arith.constant 0.000000e+00 : bf16
    %23 = vector.broadcast %cst_13 : bf16 to vector<24x128xbf16>
    %24 = vector.shape_cast %15 : vector<24x1xi1> to vector<24x1xi1>
    %25 = vector.broadcast %24 : vector<24x1xi1> to vector<24x128xi1>
    %26 = arith.select %25, %22, %23 : vector<24x128xi1>, vector<24x128xbf16>
    %c0_14 = arith.constant 0 : index
    %c128 = arith.constant 128 : index
    %27 = vector.load %arg7[%c0_14, %c128] : memref<24x256xbf16, #tpu.memory_space<vmem>>, vector<24x128xbf16>
    tpu.vector_store %arg7[%c0_14, %c128], %26 {strides = array<i32>} : memref<24x256xbf16, #tpu.memory_space<vmem>>, vector<24x128xbf16>,
    %c0_15 = arith.constant 0 : index
    %c0_16 = arith.constant 0 : index
    %28 = vector.load %arg7[%c0_15, %c0_16] : memref<24x256xbf16, #tpu.memory_space<vmem>>, vector<24x256xbf16>
    %c0_17 = arith.constant 0 : index
    %c0_18 = arith.constant 0 : index
    %29 = vector.load %arg4[%c0_17, %c0_18] : memref<256x256xbf16, #tpu.memory_space<vmem>>, vector<256x256xbf16>
    %cst_19 = arith.constant dense<0.000000e+00> : vector<24x256xf32>
    %30 = tpu.matmul %28, %29, %cst_19 {dimension_numbers = #tpu.dot_dimension_numbers<[1], [0], [0], [1], [0, 0, 1, 1], [], []>} : vector<24x256xbf16>, vector<256x256xbf16>, vector<24x256xf32> -> vector<24x256xf32>
    %31 = vector.extract_strided_slice %30 {offsets = [1, 0], sizes = [16, 128], strides = [1, 1]} : vector<24x256xf32> to vector<16x128xf32>
    %32 = vector.extract_strided_slice %30 {offsets = [0, 128], sizes = [16, 128], strides = [1, 1]} : vector<24x256xf32> to vector<16x128xf32>
    %33 = arith.addf %31, %32 : vector<16x128xf32>
    %c0_20 = arith.constant 0 : index
    %c0_21 = arith.constant 0 : index
    %c0_22 = arith.constant 0 : index
    %34 = vector.load %arg5[%c0_20, %c0_21, %c0_22] : memref<1x16x128xf32, #tpu.memory_space<vmem>>, vector<1x16x128xf32>
    %35 = vector.shape_cast %34 : vector<1x16x128xf32> to vector<16x128xf32>
    %36 = vector.shape_cast %33 : vector<16x128xf32> to vector<1x16x128xf32>
    tpu.vector_store %arg5[%c0_20, %c0_21, %c0_22], %36 {strides = array<i32>} : memref<1x16x128xf32, #tpu.memory_space<vmem>>, vector<1x16x128xf32>,
    return
  }
  func.func @transform_0(%arg0: i32, %arg1: i32) -> (i32, i32, i32) {
    %c0_i32 = arith.constant 0 : i32
    %c0_i32_0 = arith.constant 0 : i32
    return %arg0, %arg1, %c0_i32 : i32, i32, i32
  }
  func.func @transform_1(%arg0: i32, %arg1: i32) -> (i32, i32, i32) {
    %c1_i32 = arith.constant 1 : i32
    %0 = arith.addi %arg1, %c1_i32 : i32
    %c0_i32 = arith.constant 0 : i32
    %c0_i32_0 = arith.constant 0 : i32
    return %arg0, %0, %c0_i32 : i32, i32, i32
  }
  func.func @transform_2(%arg0: i32, %arg1: i32) -> (i32, i32) {
    %c0_i32 = arith.constant 0 : i32
    %c0_i32_0 = arith.constant 0 : i32
    %c0_i32_1 = arith.constant 0 : i32
    return %c0_i32, %c0_i32_0 : i32, i32
  }
  func.func @transform_3(%arg0: i32, %arg1: i32) -> (i32, i32, i32) {
    %c0_i32 = arith.constant 0 : i32
    %c0_i32_0 = arith.constant 0 : i32
    return %arg0, %arg1, %c0_i32 : i32, i32, i32
  }
}

module attributes {stable_mosaic.version = 11 : i64} {
  func.func @stft_kernel(%arg0: i32, %arg1: i32, %arg2: memref<1x16x128xbf16, #tpu.memory_space<vmem>>, %arg3: memref<1x16x128xbf16, #tpu.memory_space<vmem>>, %arg4: memref<256x256xbf16, #tpu.memory_space<vmem>>, %arg5: memref<1x16x128xf32, #tpu.memory_space<vmem>>, %arg6: memref<32x128xbf16, #tpu.memory_space<vmem>>, %arg7: memref<24x256xbf16, #tpu.memory_space<vmem>>) attributes {dimension_semantics = [#tpu.dimension_semantics<parallel>, #tpu.dimension_semantics<parallel>], iteration_bounds = array<i64: 2, 1>, scalar_prefetch = 0 : i64, scratch_operands = 2 : i64, tpu.core_type = #tpu.core_type<tc>, window_params = [{transform_indices = @transform_0, window_bounds = array<i64: 1, 16, 128>}, {transform_indices = @transform_1, window_bounds = array<i64: 1, 16, 128>}, {pipeline_mode = #tpu.pipeline_mode<synchronous>, transform_indices = @transform_2, window_bounds = array<i64: 256, 256>}, {transform_indices = @transform_3, window_bounds = array<i64: 1, 16, 128>}]} {
    %c16_i32 = arith.constant 16 : i32
    %0 = arith.muli %arg1, %c16_i32 : i32
    %c0 = arith.constant 0 : index
    %c0_0 = arith.constant 0 : index
    %c0_1 = arith.constant 0 : index
    %1 = vector.load %arg2[%c0, %c0_0, %c0_1] : memref<1x16x128xbf16, #tpu.memory_space<vmem>>, vector<1x16x128xbf16>
    %2 = vector.shape_cast %1 : vector<1x16x128xbf16> to vector<16x128xbf16>
    %c0_2 = arith.constant 0 : index
    %c0_3 = arith.constant 0 : index
    %3 = vector.load %arg6[%c0_2, %c0_3] : memref<32x128xbf16, #tpu.memory_space<vmem>>, vector<16x128xbf16>
    tpu.vector_store %arg6[%c0_2, %c0_3], %2 {strides = array<i32>} : memref<32x128xbf16, #tpu.memory_space<vmem>>, vector<16x128xbf16>,
    %c0_4 = arith.constant 0 : index
    %c0_5 = arith.constant 0 : index
    %c0_6 = arith.constant 0 : index
    %4 = vector.load %arg3[%c0_4, %c0_5, %c0_6] : memref<1x16x128xbf16, #tpu.memory_space<vmem>>, vector<1x16x128xbf16>
    %5 = vector.shape_cast %4 : vector<1x16x128xbf16> to vector<16x128xbf16>
    %c16 = arith.constant 16 : index
    %c0_7 = arith.constant 0 : index
    %6 = vector.load %arg6[%c16, %c0_7] : memref<32x128xbf16, #tpu.memory_space<vmem>>, vector<16x128xbf16>
    tpu.vector_store %arg6[%c16, %c0_7], %5 {strides = array<i32>} : memref<32x128xbf16, #tpu.memory_space<vmem>>, vector<16x128xbf16>,
    %7 = tpu.iota {dimensions = array<i32: 0>} : vector<24x1xi32>
    %c1_i32 = arith.constant 1 : i32
    %8 = arith.subi %0, %c1_i32 : i32
    %9 = vector.broadcast %8 : i32 to vector<24x1xi32>
    %10 = arith.addi %7, %9 : vector<24x1xi32>
    %c0_i32 = arith.constant 0 : i32
    %11 = vector.broadcast %c0_i32 : i32 to vector<24x1xi32>
    %12 = arith.cmpi sge, %10, %11 : vector<24x1xi32>
    %c7_i32 = arith.constant 7 : i32
    %13 = vector.broadcast %c7_i32 : i32 to vector<24x1xi32>
    %14 = arith.cmpi slt, %10, %13 : vector<24x1xi32>
    %15 = arith.andi %12, %14 : vector<24x1xi1>
    %c0_8 = arith.constant 0 : index
    %c0_9 = arith.constant 0 : index
    %16 = vector.load %arg6[%c0_8, %c0_9] : memref<32x128xbf16, #tpu.memory_space<vmem>>, vector<24x128xbf16>
    %cst = arith.constant 0.000000e+00 : bf16
    %17 = vector.broadcast %cst : bf16 to vector<24x128xbf16>
    %18 = vector.shape_cast %15 : vector<24x1xi1> to vector<24x1xi1>
    %19 = vector.broadcast %18 : vector<24x1xi1> to vector<24x128xi1>
    %20 = arith.select %19, %16, %17 : vector<24x128xi1>, vector<24x128xbf16>
    %c0_10 = arith.constant 0 : index
    %c0_11 = arith.constant 0 : index
    %21 = vector.load %arg7[%c0_10, %c0_11] : memref<24x256xbf16, #tpu.memory_space<vmem>>, vector<24x128xbf16>
    tpu.vector_store %arg7[%c0_10, %c0_11], %20 {strides = array<i32>} : memref<24x256xbf16, #tpu.memory_space<vmem>>, vector<24x128xbf16>,
    %c1 = arith.constant 1 : index
    %c0_12 = arith.constant 0 : index
    %22 = vector.load %arg6[%c1, %c0_12] : memref<32x128xbf16, #tpu.memory_space<vmem>>, vector<24x128xbf16>
    %cst_13 = arith.constant 0.000000e+00 : bf16
    %23 = vector.broadcast %cst_13 : bf16 to vector<24x128xbf16>
    %24 = vector.shape_cast %15 : vector<24x1xi1> to vector<24x1xi1>
    %25 = vector.broadcast %24 : vector<24x1xi1> to vector<24x128xi1>
    %26 = arith.select %25, %22, %23 : vector<24x128xi1>, vector<24x128xbf16>
    %c0_14 = arith.constant 0 : index
    %c128 = arith.constant 128 : index
    %27 = vector.load %arg7[%c0_14, %c128] : memref<24x256xbf16, #tpu.memory_space<vmem>>, vector<24x128xbf16>
    tpu.vector_store %arg7[%c0_14, %c128], %26 {strides = array<i32>} : memref<24x256xbf16, #tpu.memory_space<vmem>>, vector<24x128xbf16>,
    %c0_15 = arith.constant 0 : index
    %c0_16 = arith.constant 0 : index
    %28 = vector.load %arg7[%c0_15, %c0_16] : memref<24x256xbf16, #tpu.memory_space<vmem>>, vector<24x256xbf16>
    %c0_17 = arith.constant 0 : index
    %c0_18 = arith.constant 0 : index
    %29 = vector.load %arg4[%c0_17, %c0_18] : memref<256x256xbf16, #tpu.memory_space<vmem>>, vector<256x256xbf16>
    %cst_19 = arith.constant dense<0.000000e+00> : vector<24x256xf32>
    %30 = tpu.matmul %28, %29, %cst_19 {dimension_numbers = #tpu.dot_dimension_numbers<[1], [0], [0], [1], [0, 0, 1, 1], [], []>} : vector<24x256xbf16>, vector<256x256xbf16>, vector<24x256xf32> -> vector<24x256xf32>
    %31 = vector.extract_strided_slice %30 {offsets = [1, 0], sizes = [16, 128], strides = [1, 1]} : vector<24x256xf32> to vector<16x128xf32>
    %32 = vector.extract_strided_slice %30 {offsets = [0, 128], sizes = [16, 128], strides = [1, 1]} : vector<24x256xf32> to vector<16x128xf32>
    %33 = arith.addf %31, %32 : vector<16x128xf32>
    %c0_20 = arith.constant 0 : index
    %c0_21 = arith.constant 0 : index
    %c0_22 = arith.constant 0 : index
    %34 = vector.load %arg5[%c0_20, %c0_21, %c0_22] : memref<1x16x128xf32, #tpu.memory_space<vmem>>, vector<1x16x128xf32>
    %35 = vector.shape_cast %34 : vector<1x16x128xf32> to vector<16x128xf32>
    %36 = vector.shape_cast %33 : vector<16x128xf32> to vector<1x16x128xf32>
    tpu.vector_store %arg5[%c0_20, %c0_21, %c0_22], %36 {strides = array<i32>} : memref<1x16x128xf32, #tpu.memory_space<vmem>>, vector<1x16x128xf32>,
    return
  }
  func.func @transform_0(%arg0: i32, %arg1: i32) -> (i32, i32, i32) {
    %c0_i32 = arith.constant 0 : i32
    %c0_i32_0 = arith.constant 0 : i32
    return %arg0, %arg1, %c0_i32 : i32, i32, i32
  }
  func.func @transform_1(%arg0: i32, %arg1: i32) -> (i32, i32, i32) {
    %c1_i32 = arith.constant 1 : i32
    %0 = arith.addi %arg1, %c1_i32 : i32
    %c0_i32 = arith.constant 0 : i32
    %c0_i32_0 = arith.constant 0 : i32
    return %arg0, %0, %c0_i32 : i32, i32, i32
  }
  func.func @transform_2(%arg0: i32, %arg1: i32) -> (i32, i32) {
    %c0_i32 = arith.constant 0 : i32
    %c0_i32_0 = arith.constant 0 : i32
    %c0_i32_1 = arith.constant 0 : i32
    return %c0_i32, %c0_i32_0 : i32, i32
  }
  func.func @transform_3(%arg0: i32, %arg1: i32) -> (i32, i32, i32) {
    %c0_i32 = arith.constant 0 : i32
    %c0_i32_0 = arith.constant 0 : i32
    return %arg0, %arg1, %c0_i32 : i32, i32, i32
  }
}

</mosaic_0001>

<llo_original>
// kernel: tpu_custom_call.1
$region0: #{tpu_custom_call.1}
  #allocation0 [shape = 'u32[]', space=smem, size = 0x4, offset = 0x4, fixed_abs, tag = 'smem constant byte address 0x4 - core index']
  #allocation1 [shape = 'u32[144,128]{1,0:T(1,128)}', space=vmem, size = 0x12000, scoped, tag = 'internal scratch']
  #allocation2 [shape = 'bf16[32,128]{1,0:T(16,128)(2,1)}', space=vmem, size = 0x2000, scoped, tag = 'scratch operand']
  #allocation3 [shape = 'bf16[24,256]{1,0:T(8,128)(2,1)}', space=vmem, size = 0x3000, scoped, tag = 'scratch operand']
  %s0 = inlined_call_operand.hbm [shape: bf16[2,32,128], index: 0, kind: input, shape index: {}]
  %s1 = inlined_call_operand.hbm [shape: bf16[2,32,128], index: 1, kind: input, shape index: {}]
  %s2 = inlined_call_operand.hbm [shape: bf16[256,256], index: 2, kind: input, shape index: {}]
  %s3 = inlined_call_operand.hbm [shape: f32[2,16,128], index: 3, kind: output, shape index: {}]
  %s4 = sld [smem:[#allocation0]]
  $region57: #{tpu_custom_call.1} parent=0
    _
  %s6 = ssub.s32 1, %s4
  %s7 = scalar_select 0, %s6, %s4
  $region1: #{tpu_custom_call.1} parent=0
    #allocation4 [shape = 'u8[8192]{0}', space=vmem, size = 0x2000, scoped, tag = 'input window, operand 0']
    #allocation5 [shape = 's32[2]{0}', space=sflag, size = 0x8, scoped, tag = 'scoped memory for tpu_custom_call.1']
    #allocation6 [shape = 's32[2]{0}', space=sflag, size = 0x8, scoped, tag = 'scoped memory for tpu_custom_call.1']
    #allocation7 [shape = 'u8[8192]{0}', space=vmem, size = 0x2000, scoped, tag = 'input window, operand 1']
    #allocation8 [shape = 's32[2]{0}', space=sflag, size = 0x8, scoped, tag = 'scoped memory for tpu_custom_call.1']
    #allocation9 [shape = 'u8[131072]{0}', space=vmem, size = 0x20000, scoped, tag = 'input window, operand 2, single buffered']
    #allocation10 [shape = 'u8[16384]{0}', space=vmem, size = 0x4000, scoped, tag = 'output window, operand 0']
    %8 = vsyncpa [#allocation5], 0
    %s9 = scalar_lea.sflag [#allocation5], 1
    %10 = vsyncpa %s9, 0
    %11 = vsyncpa [#allocation8], 0
    %s12 = scalar_lea.sflag [#allocation8], 1
    %13 = vsyncpa %s12, 0
    %14 = vsyncpa [#allocation6], 0
    %s15 = scalar_lea.sflag [#allocation6], 1
    %16 = vsyncpa %s15, 0
    loop: start=0, step=1, limit=4
    $region2: #{tpu_custom_call.1} parent=1 // loop_pre_header
      _
    $region3: #{tpu_custom_call.1} parent=1 // loop_header
      %s18 = sphi 0, %s22
      %p19 = scmp.ge.s32.totalorder %s18, 4
      %s25 = sphi 0, %s37
      %s26 = sphi 0, %s33
      %s27 = sphi 0, %s25
      %s28 = sphi 0, %s26
      %s29 = sphi 0, %s27
      %s30 = sphi 0, %s28
      %s42 = sphi 0, %s44
      %s45 = sphi 0, %s42
      %s46 = sphi 0, %s45
      %s62 = sphi 0, %s46
      %s72 = sphi 0, %s74
      %s75 = sphi 0, %s72
      %s76 = sphi 0, %s75
      %s92 = sphi 0, %s76
      %s96 = sphi 0, %s96
      %s98 = sphi 0, %s96
      %s99 = sphi 0, %s98
      %s113 = sphi 0, %s99
      %s121 = sphi 0, %s123
      %s124 = sphi 0, %s121
      %s125 = sphi 0, %s124
      %s141 = sphi 0, %s125
    $region4: #{tpu_custom_call.1} parent=1 // loop_header_branch
      %21 = sbr.rel (%p19) target = $region8
    $region5: #{tpu_custom_call.1} parent=1 // loop_body
      %s23 = ssub.s32 %s18, 1
      %s24 = ssub.s32 %s18, 2
      %s31 = sadd.s32 1, %s26
      %p32 = scmp.ge.s32.totalorder %s31, 1
      %s33 = scalar_select %p32, 0, %s31
      %s34 = sadd.s32 1, %s25
      %s35 = scalar_select %p32, %s34, %s25
      %p36 = scmp.ge.s32.totalorder %s35, 2
      %s37 = scalar_select %p36, 0, %s35
      %s38 = ssub.s32 %s25, %s37
      %s39 = ssub.s32 %s26, %s33
      %s40 = sor.u32 %s38, %s39
      %p41 = scmp.eq.s32.totalorder %s40, 0
      %s43 = sadd.s32 %s42, 1
      %s44 = scalar_select %p41, %s42, %s43
      %p47 = pneg %p41
      %p48 = scmp.eq.s32.totalorder %s18, 1
      %p49 = por %p47, %p48
      %p50 = scmp.ne.s32.totalorder %s42, %s45
      %p51 = scmp.eq.s32.totalorder %s18, 0
      %p52 = por %p50, %p51
      %p53 = scmp.ne.s32.totalorder %s42, %s45
      %p54 = scmp.eq.s32.totalorder %s23, 1
      %p55 = por %p53, %p54
      %p56 = scmp.ne.s32.totalorder %s45, %s46
      %p57 = scmp.eq.s32.totalorder %s23, 0
      %p58 = por %p56, %p57
      %p59 = scmp.ne.s32.totalorder %s45, %s46
      %p60 = scmp.eq.s32.totalorder %s24, 1
      %p61 = por %p59, %p60
      %p63 = scmp.ne.s32.totalorder %s46, %s62
      %p64 = scmp.eq.s32.totalorder %s24, 0
      %p65 = por %p63, %p64
      %s66 = sadd.s32 %s26, 1
      %s67 = sadd.s32 %s33, 1
      %s68 = ssub.s32 %s25, %s37
      %s69 = ssub.s32 %s66, %s67
      %s70 = sor.u32 %s68, %s69
      %p71 = scmp.eq.s32.totalorder %s70, 0
      %s73 = sadd.s32 %s72, 1
      %s74 = scalar_select %p71, %s72, %s73
      %p77 = pneg %p71
      %p78 = scmp.eq.s32.totalorder %s18, 1
      %p79 = por %p77, %p78
      %p80 = scmp.ne.s32.totalorder %s72, %s75
      %p81 = scmp.eq.s32.totalorder %s18, 0
      %p82 = por %p80, %p81
      %p83 = scmp.ne.s32.totalorder %s72, %s75
      %p84 = scmp.eq.s32.totalorder %s23, 1
      %p85 = por %p83, %p84
      %p86 = scmp.ne.s32.totalorder %s75, %s76
      %p87 = scmp.eq.s32.totalorder %s23, 0
      %p88 = por %p86, %p87
      %p89 = scmp.ne.s32.totalorder %s75, %s76
      %p90 = scmp.eq.s32.totalorder %s24, 1
      %p91 = por %p89, %p90
      %p93 = scmp.ne.s32.totalorder %s76, %s92
      %p94 = scmp.eq.s32.totalorder %s24, 0
      %p95 = por %p93, %p94
      %s97 = sadd.s32 %s96, 1
      %p100 = scmp.eq.s32.totalorder %s18, 1
      %p101 = scmp.ne.s32.totalorder %s96, %s98
      %p102 = scmp.eq.s32.totalorder %s18, 0
      %p103 = por %p101, %p102
      %p104 = scmp.ne.s32.totalorder %s96, %s98
      %p105 = scmp.eq.s32.totalorder %s23, 1
      %p106 = por %p104, %p105
      %p107 = scmp.ne.s32.totalorder %s98, %s99
      %p108 = scmp.eq.s32.totalorder %s23, 0
      %p109 = por %p107, %p108
      %p110 = scmp.ne.s32.totalorder %s98, %s99
      %p111 = scmp.eq.s32.totalorder %s24, 1
      %p112 = por %p110, %p111
      %p114 = scmp.ne.s32.totalorder %s99, %s113
      %p115 = scmp.eq.s32.totalorder %s24, 0
      %p116 = por %p114, %p115
      %s117 = ssub.s32 %s25, %s37
      %s118 = ssub.s32 %s26, %s33
      %s119 = sor.u32 %s117, %s118
      %p120 = scmp.eq.s32.totalorder %s119, 0
      %s122 = sadd.s32 %s121, 1
      %s123 = scalar_select %p120, %s121, %s122
      %p126 = pneg %p120
      %p127 = scmp.eq.s32.totalorder %s18, 1
      %p128 = por %p126, %p127
      %p129 = scmp.ne.s32.totalorder %s121, %s124
      %p130 = scmp.eq.s32.totalorder %s18, 0
      %p131 = por %p129, %p130
      %p132 = scmp.ne.s32.totalorder %s121, %s124
      %p133 = scmp.eq.s32.totalorder %s23, 1
      %p134 = por %p132, %p133
      %p135 = scmp.ne.s32.totalorder %s124, %s125
      %p136 = scmp.eq.s32.totalorder %s23, 0
      %p137 = por %p135, %p136
      %p138 = scmp.ne.s32.totalorder %s124, %s125
      %p139 = scmp.eq.s32.totalorder %s24, 1
      %p140 = por %p138, %p139
      %p142 = scmp.ne.s32.totalorder %s125, %s141
      %p143 = scmp.eq.s32.totalorder %s24, 0
      %p144 = por %p142, %p143
      %p145 = scmp.le.s32.totalorder 1, %s18
      %p146 = scmp.lt.s32.totalorder %s18, 3
      %p147 = pnand %p145, %p146
      %p148 = pneg %p147
      // Predicated region
      $region9: #{tpu_custom_call.1} parent=5 // pred_check
        _
      $region10: #{tpu_custom_call.1} parent=5 // pred_check_branch
        %150 = sbr.rel (%p147) target = $region12
      $region11: #{tpu_custom_call.1} parent=5 // pred_region
        %s151 = ssub.s32 %s18, 1
        // Predicated region
        $region13: #{tpu_custom_call.1} parent=11 // pred_check
          %p152 = pneg %p109
        $region14: #{tpu_custom_call.1} parent=11 // pred_check_branch
          %154 = sbr.rel (%p152) target = $region16
        $region15: #{tpu_custom_call.1} parent=11 // pred_region
          %s156 = ssub.s32 4096, 4096
          %157 = vsyncadd [#allocation8], %s156
          %s158 = sshll.u32 [#allocation9], 4
          %s159 = int_to_ptr.vmem [resolvable:$true] %s158
          %164 = dma.hbm_to_vmem [thread:$0]  %s2, 4096, %s159, [#allocation8], 128, 128, 8
        $region16: #{tpu_custom_call.1} parent=11 // pred_fallthru
          _
      $region12: #{tpu_custom_call.1} parent=5 // pred_fallthru
        _
      %p165 = scmp.lt.s32.totalorder %s18, 2
      // Predicated region
      $region17: #{tpu_custom_call.1} parent=5 // pred_check
        %p166 = pneg %p165
      $region18: #{tpu_custom_call.1} parent=5 // pred_check_branch
        %168 = sbr.rel (%p166) target = $region20
      $region19: #{tpu_custom_call.1} parent=5 // pred_region
        // Predicated region
        $region21: #{tpu_custom_call.1} parent=19 // pred_check
          %p169 = pneg %p52
        $region22: #{tpu_custom_call.1} parent=19 // pred_check_branch
          %171 = sbr.rel (%p169) target = $region24
        $region23: #{tpu_custom_call.1} parent=19 // pred_region
          %s172 = sand.u32 %s42, 1
          %s173 = scalar_lea.sflag [#allocation5], %s172
          %s174 = sand.u32 %s42, 1
          %s175 = smul.addr %s174, 8
          %s176 = scalar_lea.vmem [#allocation4], %s175
          %s177 = smul.u32 2, %s26
          %s179 = ssub.s32 128, 128
          %180 = vsyncadd %s173, %s179
          %s181 = smul.addr %s25, 4
          %s182 = sadd.s32 %s177, %s181
          %s183 = smul.addr %s182, 64
          %s184 = scalar_lea.hbm %s0, %s183
          %s185 = sshll.u32 %s176, 4
          %s186 = int_to_ptr.vmem [resolvable:$true] %s185
          %191 = dma.hbm_to_vmem [thread:$0]  %s184, 128, %s186, %s173, 64, 64, 4
        $region24: #{tpu_custom_call.1} parent=19 // pred_fallthru
          _
        // Predicated region
        $region25: #{tpu_custom_call.1} parent=19 // pred_check
          %p192 = pneg %p82
        $region26: #{tpu_custom_call.1} parent=19 // pred_check_branch
          %194 = sbr.rel (%p192) target = $region28
        $region27: #{tpu_custom_call.1} parent=19 // pred_region
          %s195 = sand.u32 %s18, 1
          %s196 = scalar_lea.sflag [#allocation8], %s195
          %s197 = sand.u32 %s72, 1
          %s198 = smul.addr %s197, 8
          %s199 = scalar_lea.vmem [#allocation7], %s198
          %s200 = sadd.s32 %s26, 1
          %s201 = smul.u32 2, %s200
          %s203 = ssub.s32 128, 128
          %204 = vsyncadd %s196, %s203
          %s205 = smul.addr %s25, 4
          %s206 = sadd.s32 %s201, %s205
          %s207 = smul.addr %s206, 64
          %s208 = scalar_lea.hbm %s1, %s207
          %s209 = sshll.u32 %s199, 4
          %s210 = int_to_ptr.vmem [resolvable:$true] %s209
          %215 = dma.hbm_to_vmem [thread:$0]  %s208, 128, %s210, %s196, 64, 64, 4
        $region28: #{tpu_custom_call.1} parent=19 // pred_fallthru
          _
      $region20: #{tpu_custom_call.1} parent=5 // pred_fallthru
        _
      %p216 = scmp.le.s32.totalorder 1, %s18
      %p217 = scmp.lt.s32.totalorder %s18, 3
      %p218 = pnand %p216, %p217
      %p219 = pneg %p218
      // Predicated region
      $region29: #{tpu_custom_call.1} parent=5 // pred_check
        _
      $region30: #{tpu_custom_call.1} parent=5 // pred_check_branch
        %221 = sbr.rel (%p218) target = $region32
      $region31: #{tpu_custom_call.1} parent=5 // pred_region
        %s222 = ssub.s32 %s18, 1
        %s223 = sand.u32 %s45, 1
        %s224 = scalar_lea.sflag [#allocation5], %s223
        %s225 = sand.u32 %s45, 1
        %s226 = smul.addr %s225, 8
        %s227 = scalar_lea.vmem [#allocation4], %s226
        // Predicated region
        $region33: #{tpu_custom_call.1} parent=31 // pred_check
          %p228 = pneg %p58
        $region34: #{tpu_custom_call.1} parent=31 // pred_check_branch
          %230 = sbr.rel (%p228) target = $region36
        $region35: #{tpu_custom_call.1} parent=31 // pred_region
          %231 = dma.done %s224, 128
        $region36: #{tpu_custom_call.1} parent=31 // pred_fallthru
          _
        %s232 = sand.u32 %s23, 1
        %s233 = scalar_lea.sflag [#allocation8], %s232
        %s234 = sand.u32 %s75, 1
        %s235 = smul.addr %s234, 8
        %s236 = scalar_lea.vmem [#allocation7], %s235
        // Predicated region
        $region37: #{tpu_custom_call.1} parent=31 // pred_check
          %p237 = pneg %p88
        $region38: #{tpu_custom_call.1} parent=31 // pred_check_branch
          %239 = sbr.rel (%p237) target = $region40
        $region39: #{tpu_custom_call.1} parent=31 // pred_region
          %240 = dma.done %s233, 128
        $region40: #{tpu_custom_call.1} parent=31 // pred_fallthru
          _
        // Predicated region
        $region41: #{tpu_custom_call.1} parent=31 // pred_check
          %p241 = pneg %p109
        $region42: #{tpu_custom_call.1} parent=31 // pred_check_branch
          %243 = sbr.rel (%p241) target = $region44
        $region43: #{tpu_custom_call.1} parent=31 // pred_region
          %244 = dma.done [#allocation8], 4096
        $region44: #{tpu_custom_call.1} parent=31 // pred_fallthru
          _
        %s245 = sand.u32 %s45, 1
        %s246 = scalar_lea.sflag [#allocation5], %s245
        %s247 = sand.u32 %s45, 1
        %s248 = smul.addr %s247, 8
        %s249 = scalar_lea.vmem [#allocation4], %s248
        %p250 = pneg %p58
        %p251 = pneg %p55
        %s252 = sand.u32 %s23, 1
        %s253 = scalar_lea.sflag [#allocation8], %s252
        %s254 = sand.u32 %s75, 1
        %s255 = smul.addr %s254, 8
        %s256 = scalar_lea.vmem [#allocation7], %s255
        %p257 = pneg %p88
        %p258 = pneg %p85
        %p259 = pneg %p109
        %p260 = pneg %p106
        %p261 = pneg %p137
        %p262 = pneg %p134
        %s263 = sand.u32 %s124, 1
        %s264 = scalar_lea.sflag [#allocation6], %s263
        %s265 = sand.u32 %s124, 1
        %s266 = smul.addr %s265, 16
        %s267 = scalar_lea.vmem [#allocation10], %s266
        %s268 = smul.u32 2, %s28
        %s269 = sadd.s32 %s28, 1
        %s270 = smul.u32 2, %s269
        %s271 = smul.u32 2, %s28
        %s275 = smul.u32 %s28, 16
        %v276 = vld [vmem:[%s227] sm:$0xf]
        %v277 = vld [vmem:[%s227 + $0x4] sm:$0xf]
        %v280 = vunpack.c.l.b16 %v276
        %v281 = vunpack.c.l.b16 %v277
        %v282 = vpack.c.b16 %v281, %v280
        %284 = vst [vmem:[#allocation2] sm:$0xff] %v282
        %v285 = vld [vmem:[%s236] sm:$0xf]
        %v286 = vld [vmem:[%s236 + $0x4] sm:$0xf]
        %v289 = vunpack.c.l.b16 %v285
        %v290 = vunpack.c.l.b16 %v286
        %v291 = vpack.c.b16 %v290, %v289
        %293 = vst [vmem:[#allocation2 + $0x8] sm:$0xff] %v291
        %v294 = vlaneseq
        %v295 = vshrl.u32 %v294, 7
        %v296 = vadd.s32 %v295, 8
        %v297 = vadd.s32 %v295, 16
        %s298 = ssub.s32 %s275, 1
        %v299 = vstv %s298
        %v300 = vadd.s32 %v295, %v299
        %v301 = vadd.s32 %v296, %v299
        %v302 = vadd.s32 %v297, %v299
        %vm303 = vcmp.ge.s32.totalorder %v300, 0
        %vm304 = vcmp.ge.s32.totalorder %v301, 0
        %vm305 = vcmp.ge.s32.totalorder %v302, 0
        %vm306 = vcmp.lt.s32.totalorder %v300, 7
        %vm307 = vcmp.lt.s32.totalorder %v301, 7
        %vm308 = vcmp.lt.s32.totalorder %v302, 7
        %vm309 = vmand %vm303, %vm306
        %vm310 = vmand %vm304, %vm307
        %vm311 = vmand %vm305, %vm308
        %v312 = vld [vmem:[#allocation2] sm:$0xff]
        %v313 = vld [vmem:[#allocation2 + $0x8] sm:$0xf]
        %v314 = vsel %vm309, 1, 0
        %v315 = vsel %vm310, 1, 0
        %v316 = vsel %vm311, 1, 0
        %vm317 = vcmp.eq.s32.totalorder %v314, 1
        %vm318 = vcmp.eq.s32.totalorder %v315, 1
        %vm319 = vcmp.eq.s32.totalorder %v316, 1
        %vm320 = vmpackc.low %vm317, %vm317
        %vm321 = vmpackc.low %vm318, %vm318
        %vm322 = vmpackc.low %vm319, %vm319
        %v323 = vsel %vm320, 65537, 0
        %v324 = vsel %vm321, 65537, 0
        %v325 = vsel %vm322, 65537, 0
        %v326 = vunpack.c.l.b16 %v323
        %v327 = vunpack.c.l.b16 %v324
        %v328 = vunpack.c.l.b16 %v325
        %v329 = vpack.c.b16 %v327, %v326
        %v330 = vpack.c.b16 %v328, %v328
        %vm331 = vcmp.ne.s16.totalorder %v329, 0
        %vm332 = vcmp.ne.s16.totalorder %v330, 0
        %v333 = vsel %vm331, %v312, 0
        %v334 = vsel %vm332, %v313, 0
        %v337 = vunpack.c.l.b16 %v333
        %v338 = vunpack.c.h.b16 %v333
        %v339 = vunpack.c.l.b16 %v334
        %v340 = vpack.c.b16 %v337, %v337
        %v341 = vpack.c.b16 %v338, %v338
        %v342 = vpack.c.b16 %v339, %v339
        %346 = vst [vmem:[#allocation3] sm:$0xf] %v340
        %347 = vst [vmem:[#allocation3 + $0x8] sm:$0xf] %v341
        %348 = vst [vmem:[#allocation3 + $0x10] sm:$0xf] %v342
        %v349 = vld [vmem:[#allocation2] sm:$0xff]
        %v350 = vld [vmem:[#allocation2 + $0x8] sm:$0x1f]
        %vm351 = vsmask.f32 256
        %v353 = vshrl.u32 %v329, 16
        %v355 = vrot.slane %v353, 7
        %v356 = vshll.u32 %v329, 16
        %v358 = vor.u32 %v355, %v356
        %v360 = vshrl.u32 %v330, 16
        %v362 = vrot.slane %v360, 7
        %v363 = vshll.u32 %v330, 16
        %v365 = vor.u32 %v362, %v363
        %v366 = vsel %vm351, %v355, %v365
        %vm367 = vcmp.ne.s16.totalorder %v358, 0
        %vm368 = vcmp.ne.s16.totalorder %v366, 0
        %v369 = vsel %vm367, %v349, 0
        %v370 = vsel %vm368, %v350, 0
        %v373 = vunpack.c.l.b16 %v369
        %v374 = vunpack.c.h.b16 %v369
        %v375 = vunpack.c.l.b16 %v370
        %v376 = vunpack.c.h.b16 %v370
        %v377 = vpack.c.b16 %v373, %v373
        %v378 = vpack.c.b16 %v374, %v374
        %v379 = vpack.c.b16 %v375, %v375
        %v380 = vpack.c.b16 %v376, %v376
        %vm381 = vsmask.f32 3328
        %vm382 = vsmask.f32 7440
        %vm383 = vmor %vm381, %vm382
        %v385 = vshrl.u32 %v377, 16
        %v387 = vrot.slane %v385, 4
        %v388 = vshll.u32 %v377, 16
        %v390 = vrot.slane %v388, 5
        %v391 = vor.u32 %v387, %v390
        %v392 = vrot.slane %v391, 4
        %v394 = vshll.u32 %v378, 16
        %v396 = vrot.slane %v394, 5
        %v397 = vsel %vm383, %v392, %v396
        %v398 = vshrl.u32 %v378, 16
        %v400 = vrot.slane %v398, 4
        %v401 = vor.u32 %v400, %v396
        %v402 = vrot.slane %v401, 4
        %v404 = vshll.u32 %v379, 16
        %v406 = vrot.slane %v404, 5
        %v407 = vsel %vm383, %v402, %v406
        %v408 = vshrl.u32 %v379, 16
        %v410 = vrot.slane %v408, 4
        %v411 = vor.u32 %v410, %v406
        %v412 = vrot.slane %v411, 4
        %v414 = vshll.u32 %v380, 16
        %v416 = vrot.slane %v414, 5
        %v417 = vsel %vm383, %v412, %v416
        %421 = vst [vmem:[#allocation3 + $0x4] sm:$0xf] %v397
        %422 = vst [vmem:[#allocation3 + $0xc] sm:$0xf] %v407
        %423 = vst [vmem:[#allocation3 + $0x14] sm:$0xf] %v417
        %v424 = vld [vmem:[#allocation3] sm:$0xff]
        %v425 = vld [vmem:[#allocation3 + $0x8] sm:$0xff]
        %v426 = vld [vmem:[#allocation3 + $0x10] sm:$0xff]
        %v427 = vld [vmem:[#allocation9] sm:$0xff]
        %v428 = vld [vmem:[#allocation9 + $0x8] sm:$0xff]
        %v429 = vld [vmem:[#allocation9 + $0x10] sm:$0xff]
        %v430 = vld [vmem:[#allocation9 + $0x18] sm:$0xff]
        %v431 = vld [vmem:[#allocation9 + $0x20] sm:$0xff]
        %v432 = vld [vmem:[#allocation9 + $0x28] sm:$0xff]
        %v433 = vld [vmem:[#allocation9 + $0x30] sm:$0xff]
        %v434 = vld [vmem:[#allocation9 + $0x38] sm:$0xff]
        %v435 = vld [vmem:[#allocation9 + $0x40] sm:$0xff]
        %v436 = vld [vmem:[#allocation9 + $0x48] sm:$0xff]
        %v437 = vld [vmem:[#allocation9 + $0x50] sm:$0xff]
        %v438 = vld [vmem:[#allocation9 + $0x58] sm:$0xff]
        %v439 = vld [vmem:[#allocation9 + $0x60] sm:$0xff]
        %v440 = vld [vmem:[#allocation9 + $0x68] sm:$0xff]
        %v441 = vld [vmem:[#allocation9 + $0x70] sm:$0xff]
        %v442 = vld [vmem:[#allocation9 + $0x78] sm:$0xff]
        %v443 = vld [vmem:[#allocation9 + $0x80] sm:$0xff]
        %v444 = vld [vmem:[#allocation9 + $0x88] sm:$0xff]
        %v445 = vld [vmem:[#allocation9 + $0x90] sm:$0xff]
        %v446 = vld [vmem:[#allocation9 + $0x98] sm:$0xff]
        %v447 = vld [vmem:[#allocation9 + $0xa0] sm:$0xff]
        %v448 = vld [vmem:[#allocation9 + $0xa8] sm:$0xff]
        %v449 = vld [vmem:[#allocation9 + $0xb0] sm:$0xff]
        %v450 = vld [vmem:[#allocation9 + $0xb8] sm:$0xff]
        %v451 = vld [vmem:[#allocation9 + $0xc0] sm:$0xff]
        %v452 = vld [vmem:[#allocation9 + $0xc8] sm:$0xff]
        %v453 = vld [vmem:[#allocation9 + $0xd0] sm:$0xff]
        %v454 = vld [vmem:[#allocation9 + $0xd8] sm:$0xff]
        %v455 = vld [vmem:[#allocation9 + $0xe0] sm:$0xff]
        %v456 = vld [vmem:[#allocation9 + $0xe8] sm:$0xff]
        %v457 = vld [vmem:[#allocation9 + $0xf0] sm:$0xff]
        %v458 = vld [vmem:[#allocation9 + $0xf8] sm:$0xff]
        %v462 = vunpack.c.l.b16 %v424
        %v463 = vunpack.c.h.b16 %v424
        %v464 = vunpack.c.l.b16 %v425
        %v465 = vunpack.c.h.b16 %v425
        %v466 = vunpack.c.l.b16 %v426
        %v467 = vunpack.c.h.b16 %v426
        %v468 = vpack.c.b16 %v464, %v462
        %v469 = vpack.c.b16 %v465, %v463
        %v470 = vpack.c.b16 %v466, %v466
        %v471 = vpack.c.b16 %v467, %v467
        %v508 = vunpack.c.l.b16 %v427
        %v509 = vunpack.c.h.b16 %v427
        %v510 = vunpack.c.l.b16 %v428
        %v511 = vunpack.c.h.b16 %v428
        %v512 = vunpack.c.l.b16 %v429
        %v513 = vunpack.c.h.b16 %v429
        %v514 = vunpack.c.l.b16 %v430
        %v515 = vunpack.c.h.b16 %v430
        %v516 = vunpack.c.l.b16 %v431
        %v517 = vunpack.c.h.b16 %v431
        %v518 = vunpack.c.l.b16 %v432
        %v519 = vunpack.c.h.b16 %v432
        %v520 = vunpack.c.l.b16 %v433
        %v521 = vunpack.c.h.b16 %v433
        %v522 = vunpack.c.l.b16 %v434
        %v523 = vunpack.c.h.b16 %v434
        %v524 = vunpack.c.l.b16 %v435
        %v525 = vunpack.c.h.b16 %v435
        %v526 = vunpack.c.l.b16 %v436
        %v527 = vunpack.c.h.b16 %v436
        %v528 = vunpack.c.l.b16 %v437
        %v529 = vunpack.c.h.b16 %v437
        %v530 = vunpack.c.l.b16 %v438
        %v531 = vunpack.c.h.b16 %v438
        %v532 = vunpack.c.l.b16 %v439
        %v533 = vunpack.c.h.b16 %v439
        %v534 = vunpack.c.l.b16 %v440
        %v535 = vunpack.c.h.b16 %v440
        %v536 = vunpack.c.l.b16 %v441
        %v537 = vunpack.c.h.b16 %v441
        %v538 = vunpack.c.l.b16 %v442
        %v539 = vunpack.c.h.b16 %v442
        %v540 = vunpack.c.l.b16 %v443
        %v541 = vunpack.c.h.b16 %v443
        %v542 = vunpack.c.l.b16 %v444
        %v543 = vunpack.c.h.b16 %v444
        %v544 = vunpack.c.l.b16 %v445
        %v545 = vunpack.c.h.b16 %v445
        %v546 = vunpack.c.l.b16 %v446
        %v547 = vunpack.c.h.b16 %v446
        %v548 = vunpack.c.l.b16 %v447
        %v549 = vunpack.c.h.b16 %v447
        %v550 = vunpack.c.l.b16 %v448
        %v551 = vunpack.c.h.b16 %v448
        %v552 = vunpack.c.l.b16 %v449
        %v553 = vunpack.c.h.b16 %v449
        %v554 = vunpack.c.l.b16 %v450
        %v555 = vunpack.c.h.b16 %v450
        %v556 = vunpack.c.l.b16 %v451
        %v557 = vunpack.c.h.b16 %v451
        %v558 = vunpack.c.l.b16 %v452
        %v559 = vunpack.c.h.b16 %v452
        %v560 = vunpack.c.l.b16 %v453
        %v561 = vunpack.c.h.b16 %v453
        %v562 = vunpack.c.l.b16 %v454
        %v563 = vunpack.c.h.b16 %v454
        %v564 = vunpack.c.l.b16 %v455
        %v565 = vunpack.c.h.b16 %v455
        %v566 = vunpack.c.l.b16 %v456
        %v567 = vunpack.c.h.b16 %v456
        %v568 = vunpack.c.l.b16 %v457
        %v569 = vunpack.c.h.b16 %v457
        %v570 = vunpack.c.l.b16 %v458
        %v571 = vunpack.c.h.b16 %v458
        %v572 = vpack.c.b16 %v510, %v508
        %v573 = vpack.c.b16 %v511, %v509
        %v574 = vpack.c.b16 %v514, %v512
        %v575 = vpack.c.b16 %v515, %v513
        %v576 = vpack.c.b16 %v518, %v516
        %v577 = vpack.c.b16 %v519, %v517
        %v578 = vpack.c.b16 %v522, %v520
        %v579 = vpack.c.b16 %v523, %v521
        %v580 = vpack.c.b16 %v526, %v524
        %v581 = vpack.c.b16 %v527, %v525
        %v582 = vpack.c.b16 %v530, %v528
        %v583 = vpack.c.b16 %v531, %v529
        %v584 = vpack.c.b16 %v534, %v532
        %v585 = vpack.c.b16 %v535, %v533
        %v586 = vpack.c.b16 %v538, %v536
        %v587 = vpack.c.b16 %v539, %v537
        %v588 = vpack.c.b16 %v542, %v540
        %v589 = vpack.c.b16 %v543, %v541
        %v590 = vpack.c.b16 %v546, %v544
        %v591 = vpack.c.b16 %v547, %v545
        %v592 = vpack.c.b16 %v550, %v548
        %v593 = vpack.c.b16 %v551, %v549
        %v594 = vpack.c.b16 %v554, %v552
        %v595 = vpack.c.b16 %v555, %v553
        %v596 = vpack.c.b16 %v558, %v556
        %v597 = vpack.c.b16 %v559, %v557
        %v598 = vpack.c.b16 %v562, %v560
        %v599 = vpack.c.b16 %v563, %v561
        %v600 = vpack.c.b16 %v566, %v564
        %v601 = vpack.c.b16 %v567, %v565
        %v602 = vpack.c.b16 %v570, %v568
        %v603 = vpack.c.b16 %v571, %v569
        %636 = vmatprep.subr.bf16.mxu0 %v573
        %637 = vmatpush1.bf16.msra.mxu0 %v572
        %638 = vmatprep.subr.bf16.mxu0 %v575
        %639 = vmatpush1.bf16.msra.mxu0 %v574
        %640 = vmatprep.subr.bf16.mxu0 %v577
        %641 = vmatpush1.bf16.msra.mxu0 %v576
        %642 = vmatprep.subr.bf16.mxu0 %v579
        %643 = vmatpush1.bf16.msra.mxu0 %v578
        %644 = vmatprep.subr.bf16.mxu0 %v581
        %645 = vmatpush1.bf16.msra.mxu0 %v580
        %646 = vmatprep.subr.bf16.mxu0 %v583
        %647 = vmatpush1.bf16.msra.mxu0 %v582
        %648 = vmatprep.subr.bf16.mxu0 %v585
        %649 = vmatpush1.bf16.msra.mxu0 %v584
        %650 = vmatprep.subr.bf16.mxu0 %v587
        %651 = vmatpush1.bf16.msra.mxu0 %v586
        %652 = vmatprep.subr.bf16.mxu0 %v589
        %653 = vmatpush1.bf16.msra.mxu0 %v588
        %654 = vmatprep.subr.bf16.mxu0 %v591
        %655 = vmatpush1.bf16.msra.mxu0 %v590
        %656 = vmatprep.subr.bf16.mxu0 %v593
        %657 = vmatpush1.bf16.msra.mxu0 %v592
        %658 = vmatprep.subr.bf16.mxu0 %v595
        %659 = vmatpush1.bf16.msra.mxu0 %v594
        %660 = vmatprep.subr.bf16.mxu0 %v597
        %661 = vmatpush1.bf16.msra.mxu0 %v596
        %662 = vmatprep.subr.bf16.mxu0 %v599
        %663 = vmatpush1.bf16.msra.mxu0 %v598
        %664 = vmatprep.subr.bf16.mxu0 %v601
        %665 = vmatpush1.bf16.msra.mxu0 %v600
        %666 = vmatprep.subr.bf16.mxu0 %v603
        %667 = vmatpush1.bf16.msra.mxu0 %v602
        %668 = vmatprep.mubr.bf16.mxu0 %v469
        %669 = vmatmul.mubr.bf16.gmra.mrb[0].mxu0 %v468
        %v670 = vpop.f32.mrb[0].mxu0
        %v671 = vadd.f32 0.0, %v670
        %v672 = vpop.f32.mrb[0].mxu0
        %v673 = vadd.f32 0.0, %v672
        %v674 = vpop.f32.mrb[0].mxu0
        %v675 = vadd.f32 0.0, %v674
        %v676 = vpop.f32.mrb[0].mxu0
        %v677 = vadd.f32 0.0, %v676
        %678 = vmatprep.mubr.bf16.mxu0 %v471
        %679 = vmatmul.mubr.bf16.gmra.mrb[0].mxu0 %v470
        %v680 = vpop.f32.mrb[0].mxu0
        %v681 = vadd.f32 0.0, %v680
        %v682 = vpop.f32.mrb[0].mxu0
        %v683 = vpop.f32.mrb[0].mxu0
        %v684 = vpop.f32.mrb[0].mxu0
        %685 = vdwg.mxu0
        %vm688 = vcmask 1040384
        %v689 = vrot.slane %v673, 7
        %v690 = vrot.slane %v677, 7
        %v691 = vsel %vm688, %v689, %v690
        %v695 = vadd.f32 %v671, %v689
        %v696 = vadd.f32 %v675, %v691
        %v697 = vadd.f32 %v681, %v690
        %698 = vst [vmem:[%s267 - $0x1] sm:$0xfe] %v695
        %699 = vst [vmem:[%s267 + $0x7] sm:$0xff] %v696
        %700 = vst [vmem:[%s267 + $0xf] sm:$0x1] %v697
        %s701 = sand.u32 %s124, 1
        %s702 = scalar_lea.sflag [#allocation6], %s701
        %s703 = sand.u32 %s124, 1
        %s704 = smul.addr %s703, 16
        %s705 = scalar_lea.vmem [#allocation10], %s704
        // Predicated region
        $region45: #{tpu_custom_call.1} parent=31 // pred_check
          %p706 = pneg %p134
        $region46: #{tpu_custom_call.1} parent=31 // pred_check_branch
          %708 = sbr.rel (%p706) target = $region48
        $region47: #{tpu_custom_call.1} parent=31 // pred_region
          %s709 = smul.u32 2, %s28
          %s711 = ssub.s32 256, 256
          %712 = vsyncadd %s702, %s711
          %s713 = smul.addr %s27, 2
          %s714 = sadd.s32 %s709, %s713
          %s715 = smul.addr %s714, 128
          %s716 = scalar_lea.hbm %s3, %s715
          %s717 = sshll.u32 %s705, 4
          %s718 = int_to_ptr.vmem [resolvable:$true] %s717
          %723 = dma.vmem_to_hbm [thread:$0]  %s718, 256, %s716, %s702, 128, 128, 8
        $region48: #{tpu_custom_call.1} parent=31 // pred_fallthru
          _
      $region32: #{tpu_custom_call.1} parent=5 // pred_fallthru
        _
      %p724 = scmp.le.s32.totalorder 2, %s18
      // Predicated region
      $region49: #{tpu_custom_call.1} parent=5 // pred_check
        %p725 = pneg %p724
      $region50: #{tpu_custom_call.1} parent=5 // pred_check_branch
        %727 = sbr.rel (%p725) target = $region52
      $region51: #{tpu_custom_call.1} parent=5 // pred_region
        %s728 = ssub.s32 %s18, 2
        // Predicated region
        $region53: #{tpu_custom_call.1} parent=51 // pred_check
          %p729 = pneg %p140
        $region54: #{tpu_custom_call.1} parent=51 // pred_check_branch
          %731 = sbr.rel (%p729) target = $region56
        $region55: #{tpu_custom_call.1} parent=51 // pred_region
          %s732 = sand.u32 %s125, 1
          %s733 = scalar_lea.sflag [#allocation6], %s732
          %s734 = sand.u32 %s125, 1
          %s735 = smul.addr %s734, 16
          %s736 = scalar_lea.vmem [#allocation10], %s735
          %737 = dma.done %s733, 256
        $region56: #{tpu_custom_call.1} parent=51 // pred_fallthru
          _
      $region52: #{tpu_custom_call.1} parent=5 // pred_fallthru
        _
    $region6: #{tpu_custom_call.1} parent=1 // loop_footer
      %s22 = sadd.s32 1, %s18
    $region7: #{tpu_custom_call.1} parent=1 // loop_footer_branch
      %17 = sbr.rel target = $region3
    $region8: #{tpu_custom_call.1} parent=1 // loop_exit
      _
    %738 = vsyncpa [#allocation5], 1
    %s739 = scalar_lea.sflag [#allocation5], 1
    %740 = vsyncpa %s739, 1
    %741 = vsyncpa [#allocation8], 1
    %s742 = scalar_lea.sflag [#allocation8], 1
    %743 = vsyncpa %s742, 1
    %744 = vsyncpa [#allocation6], 1
    %s745 = scalar_lea.sflag [#allocation6], 1
    %746 = vsyncpa %s745, 1

// kernel: tpu_custom_call.1
$region0: #{tpu_custom_call.1}
  #allocation0 [shape = 'u32[]', space=smem, size = 0x4, offset = 0x4, fixed_abs, tag = 'smem constant byte address 0x4 - core index']
  #allocation1 [shape = 'u32[144,128]{1,0:T(1,128)}', space=vmem, size = 0x12000, scoped, tag = 'internal scratch']
  #allocation2 [shape = 'bf16[32,128]{1,0:T(16,128)(2,1)}', space=vmem, size = 0x2000, scoped, tag = 'scratch operand']
  #allocation3 [shape = 'bf16[24,256]{1,0:T(8,128)(2,1)}', space=vmem, size = 0x3000, scoped, tag = 'scratch operand']
  %s0 = inlined_call_operand.hbm [shape: bf16[2,32,128], index: 0, kind: input, shape index: {}]
  %s1 = inlined_call_operand.hbm [shape: bf16[2,32,128], index: 1, kind: input, shape index: {}]
  %s2 = inlined_call_operand.hbm [shape: bf16[256,256], index: 2, kind: input, shape index: {}]
  %s3 = inlined_call_operand.hbm [shape: f32[2,16,128], index: 3, kind: output, shape index: {}]
  %s4 = sld [smem:[#allocation0]]
  $region57: #{tpu_custom_call.1} parent=0
    _
  %s6 = ssub.s32 1, %s4
  %s7 = scalar_select 0, %s6, %s4
  $region1: #{tpu_custom_call.1} parent=0
    #allocation4 [shape = 'u8[8192]{0}', space=vmem, size = 0x2000, scoped, tag = 'input window, operand 0']
    #allocation5 [shape = 's32[2]{0}', space=sflag, size = 0x8, scoped, tag = 'scoped memory for tpu_custom_call.1']
    #allocation6 [shape = 's32[2]{0}', space=sflag, size = 0x8, scoped, tag = 'scoped memory for tpu_custom_call.1']
    #allocation7 [shape = 'u8[8192]{0}', space=vmem, size = 0x2000, scoped, tag = 'input window, operand 1']
    #allocation8 [shape = 's32[2]{0}', space=sflag, size = 0x8, scoped, tag = 'scoped memory for tpu_custom_call.1']
    #allocation9 [shape = 'u8[131072]{0}', space=vmem, size = 0x20000, scoped, tag = 'input window, operand 2, single buffered']
    #allocation10 [shape = 'u8[16384]{0}', space=vmem, size = 0x4000, scoped, tag = 'output window, operand 0']
    %8 = vsyncpa [#allocation5], 0
    %s9 = scalar_lea.sflag [#allocation5], 1
    %10 = vsyncpa %s9, 0
    %11 = vsyncpa [#allocation8], 0
    %s12 = scalar_lea.sflag [#allocation8], 1
    %13 = vsyncpa %s12, 0
    %14 = vsyncpa [#allocation6], 0
    %s15 = scalar_lea.sflag [#allocation6], 1
    %16 = vsyncpa %s15, 0
    loop: start=0, step=1, limit=4
    $region2: #{tpu_custom_call.1} parent=1 // loop_pre_header
      _
    $region3: #{tpu_custom_call.1} parent=1 // loop_header
      %s18 = sphi 0, %s22
      %p19 = scmp.ge.s32.totalorder %s18, 4
      %s25 = sphi 0, %s37
      %s26 = sphi 0, %s33
      %s27 = sphi 0, %s25
      %s28 = sphi 0, %s26
      %s29 = sphi 0, %s27
      %s30 = sphi 0, %s28
      %s42 = sphi 0, %s44
      %s45 = sphi 0, %s42
      %s46 = sphi 0, %s45
      %s62 = sphi 0, %s46
      %s72 = sphi 0, %s74
      %s75 = sphi 0, %s72
      %s76 = sphi 0, %s75
      %s92 = sphi 0, %s76
      %s96 = sphi 0, %s96
      %s98 = sphi 0, %s96
      %s99 = sphi 0, %s98
      %s113 = sphi 0, %s99
      %s121 = sphi 0, %s123
      %s124 = sphi 0, %s121
      %s125 = sphi 0, %s124
      %s141 = sphi 0, %s125
    $region4: #{tpu_custom_call.1} parent=1 // loop_header_branch
      %21 = sbr.rel (%p19) target = $region8
    $region5: #{tpu_custom_call.1} parent=1 // loop_body
      %s23 = ssub.s32 %s18, 1
      %s24 = ssub.s32 %s18, 2
      %s31 = sadd.s32 1, %s26
      %p32 = scmp.ge.s32.totalorder %s31, 1
      %s33 = scalar_select %p32, 0, %s31
      %s34 = sadd.s32 1, %s25
      %s35 = scalar_select %p32, %s34, %s25
      %p36 = scmp.ge.s32.totalorder %s35, 2
      %s37 = scalar_select %p36, 0, %s35
      %s38 = ssub.s32 %s25, %s37
      %s39 = ssub.s32 %s26, %s33
      %s40 = sor.u32 %s38, %s39
      %p41 = scmp.eq.s32.totalorder %s40, 0
      %s43 = sadd.s32 %s42, 1
      %s44 = scalar_select %p41, %s42, %s43
      %p47 = pneg %p41
      %p48 = scmp.eq.s32.totalorder %s18, 1
      %p49 = por %p47, %p48
      %p50 = scmp.ne.s32.totalorder %s42, %s45
      %p51 = scmp.eq.s32.totalorder %s18, 0
      %p52 = por %p50, %p51
      %p53 = scmp.ne.s32.totalorder %s42, %s45
      %p54 = scmp.eq.s32.totalorder %s23, 1
      %p55 = por %p53, %p54
      %p56 = scmp.ne.s32.totalorder %s45, %s46
      %p57 = scmp.eq.s32.totalorder %s23, 0
      %p58 = por %p56, %p57
      %p59 = scmp.ne.s32.totalorder %s45, %s46
      %p60 = scmp.eq.s32.totalorder %s24, 1
      %p61 = por %p59, %p60
      %p63 = scmp.ne.s32.totalorder %s46, %s62
      %p64 = scmp.eq.s32.totalorder %s24, 0
      %p65 = por %p63, %p64
      %s66 = sadd.s32 %s26, 1
      %s67 = sadd.s32 %s33, 1
      %s68 = ssub.s32 %s25, %s37
      %s69 = ssub.s32 %s66, %s67
      %s70 = sor.u32 %s68, %s69
      %p71 = scmp.eq.s32.totalorder %s70, 0
      %s73 = sadd.s32 %s72, 1
      %s74 = scalar_select %p71, %s72, %s73
      %p77 = pneg %p71
      %p78 = scmp.eq.s32.totalorder %s18, 1
      %p79 = por %p77, %p78
      %p80 = scmp.ne.s32.totalorder %s72, %s75
      %p81 = scmp.eq.s32.totalorder %s18, 0
      %p82 = por %p80, %p81
      %p83 = scmp.ne.s32.totalorder %s72, %s75
      %p84 = scmp.eq.s32.totalorder %s23, 1
      %p85 = por %p83, %p84
      %p86 = scmp.ne.s32.totalorder %s75, %s76
      %p87 = scmp.eq.s32.totalorder %s23, 0
      %p88 = por %p86, %p87
      %p89 = scmp.ne.s32.totalorder %s75, %s76
      %p90 = scmp.eq.s32.totalorder %s24, 1
      %p91 = por %p89, %p90
      %p93 = scmp.ne.s32.totalorder %s76, %s92
      %p94 = scmp.eq.s32.totalorder %s24, 0
      %p95 = por %p93, %p94
      %s97 = sadd.s32 %s96, 1
      %p100 = scmp.eq.s32.totalorder %s18, 1
      %p101 = scmp.ne.s32.totalorder %s96, %s98
      %p102 = scmp.eq.s32.totalorder %s18, 0
      %p103 = por %p101, %p102
      %p104 = scmp.ne.s32.totalorder %s96, %s98
      %p105 = scmp.eq.s32.totalorder %s23, 1
      %p106 = por %p104, %p105
      %p107 = scmp.ne.s32.totalorder %s98, %s99
      %p108 = scmp.eq.s32.totalorder %s23, 0
      %p109 = por %p107, %p108
      %p110 = scmp.ne.s32.totalorder %s98, %s99
      %p111 = scmp.eq.s32.totalorder %s24, 1
      %p112 = por %p110, %p111
      %p114 = scmp.ne.s32.totalorder %s99, %s113
      %p115 = scmp.eq.s32.totalorder %s24, 0
      %p116 = por %p114, %p115
      %s117 = ssub.s32 %s25, %s37
      %s118 = ssub.s32 %s26, %s33
      %s119 = sor.u32 %s117, %s118
      %p120 = scmp.eq.s32.totalorder %s119, 0
      %s122 = sadd.s32 %s121, 1
      %s123 = scalar_select %p120, %s121, %s122
      %p126 = pneg %p120
      %p127 = scmp.eq.s32.totalorder %s18, 1
      %p128 = por %p126, %p127
      %p129 = scmp.ne.s32.totalorder %s121, %s124
      %p130 = scmp.eq.s32.totalorder %s18, 0
      %p131 = por %p129, %p130
      %p132 = scmp.ne.s32.totalorder %s121, %s124
      %p133 = scmp.eq.s32.totalorder %s23, 1
      %p134 = por %p132, %p133
      %p135 = scmp.ne.s32.totalorder %s124, %s125
      %p136 = scmp.eq.s32.totalorder %s23, 0
      %p137 = por %p135, %p136
      %p138 = scmp.ne.s32.totalorder %s124, %s125
      %p139 = scmp.eq.s32.totalorder %s24, 1
      %p140 = por %p138, %p139
      %p142 = scmp.ne.s32.totalorder %s125, %s141
      %p143 = scmp.eq.s32.totalorder %s24, 0
      %p144 = por %p142, %p143
      %p145 = scmp.le.s32.totalorder 1, %s18
      %p146 = scmp.lt.s32.totalorder %s18, 3
      %p147 = pnand %p145, %p146
      %p148 = pneg %p147
      // Predicated region
      $region9: #{tpu_custom_call.1} parent=5 // pred_check
        _
      $region10: #{tpu_custom_call.1} parent=5 // pred_check_branch
        %150 = sbr.rel (%p147) target = $region12
      $region11: #{tpu_custom_call.1} parent=5 // pred_region
        %s151 = ssub.s32 %s18, 1
        // Predicated region
        $region13: #{tpu_custom_call.1} parent=11 // pred_check
          %p152 = pneg %p109
        $region14: #{tpu_custom_call.1} parent=11 // pred_check_branch
          %154 = sbr.rel (%p152) target = $region16
        $region15: #{tpu_custom_call.1} parent=11 // pred_region
          %s156 = ssub.s32 4096, 4096
          %157 = vsyncadd [#allocation8], %s156
          %s158 = sshll.u32 [#allocation9], 4
          %s159 = int_to_ptr.vmem [resolvable:$true] %s158
          %164 = dma.hbm_to_vmem [thread:$0]  %s2, 4096, %s159, [#allocation8], 128, 128, 8
        $region16: #{tpu_custom_call.1} parent=11 // pred_fallthru
          _
      $region12: #{tpu_custom_call.1} parent=5 // pred_fallthru
        _
      %p165 = scmp.lt.s32.totalorder %s18, 2
      // Predicated region
      $region17: #{tpu_custom_call.1} parent=5 // pred_check
        %p166 = pneg %p165
      $region18: #{tpu_custom_call.1} parent=5 // pred_check_branch
        %168 = sbr.rel (%p166) target = $region20
      $region19: #{tpu_custom_call.1} parent=5 // pred_region
        // Predicated region
        $region21: #{tpu_custom_call.1} parent=19 // pred_check
          %p169 = pneg %p52
        $region22: #{tpu_custom_call.1} parent=19 // pred_check_branch
          %171 = sbr.rel (%p169) target = $region24
        $region23: #{tpu_custom_call.1} parent=19 // pred_region
          %s172 = sand.u32 %s42, 1
          %s173 = scalar_lea.sflag [#allocation5], %s172
          %s174 = sand.u32 %s42, 1
          %s175 = smul.addr %s174, 8
          %s176 = scalar_lea.vmem [#allocation4], %s175
          %s177 = smul.u32 2, %s26
          %s179 = ssub.s32 128, 128
          %180 = vsyncadd %s173, %s179
          %s181 = smul.addr %s25, 4
          %s182 = sadd.s32 %s177, %s181
          %s183 = smul.addr %s182, 64
          %s184 = scalar_lea.hbm %s0, %s183
          %s185 = sshll.u32 %s176, 4
          %s186 = int_to_ptr.vmem [resolvable:$true] %s185
          %191 = dma.hbm_to_vmem [thread:$0]  %s184, 128, %s186, %s173, 64, 64, 4
        $region24: #{tpu_custom_call.1} parent=19 // pred_fallthru
          _
        // Predicated region
        $region25: #{tpu_custom_call.1} parent=19 // pred_check
          %p192 = pneg %p82
        $region26: #{tpu_custom_call.1} parent=19 // pred_check_branch
          %194 = sbr.rel (%p192) target = $region28
        $region27: #{tpu_custom_call.1} parent=19 // pred_region
          %s195 = sand.u32 %s18, 1
          %s196 = scalar_lea.sflag [#allocation8], %s195
          %s197 = sand.u32 %s72, 1
          %s198 = smul.addr %s197, 8
          %s199 = scalar_lea.vmem [#allocation7], %s198
          %s200 = sadd.s32 %s26, 1
          %s201 = smul.u32 2, %s200
          %s203 = ssub.s32 128, 128
          %204 = vsyncadd %s196, %s203
          %s205 = smul.addr %s25, 4
          %s206 = sadd.s32 %s201, %s205
          %s207 = smul.addr %s206, 64
          %s208 = scalar_lea.hbm %s1, %s207
          %s209 = sshll.u32 %s199, 4
          %s210 = int_to_ptr.vmem [resolvable:$true] %s209
          %215 = dma.hbm_to_vmem [thread:$0]  %s208, 128, %s210, %s196, 64, 64, 4
        $region28: #{tpu_custom_call.1} parent=19 // pred_fallthru
          _
      $region20: #{tpu_custom_call.1} parent=5 // pred_fallthru
        _
      %p216 = scmp.le.s32.totalorder 1, %s18
      %p217 = scmp.lt.s32.totalorder %s18, 3
      %p218 = pnand %p216, %p217
      %p219 = pneg %p218
      // Predicated region
      $region29: #{tpu_custom_call.1} parent=5 // pred_check
        _
      $region30: #{tpu_custom_call.1} parent=5 // pred_check_branch
        %221 = sbr.rel (%p218) target = $region32
      $region31: #{tpu_custom_call.1} parent=5 // pred_region
        %s222 = ssub.s32 %s18, 1
        %s223 = sand.u32 %s45, 1
        %s224 = scalar_lea.sflag [#allocation5], %s223
        %s225 = sand.u32 %s45, 1
        %s226 = smul.addr %s225, 8
        %s227 = scalar_lea.vmem [#allocation4], %s226
        // Predicated region
        $region33: #{tpu_custom_call.1} parent=31 // pred_check
          %p228 = pneg %p58
        $region34: #{tpu_custom_call.1} parent=31 // pred_check_branch
          %230 = sbr.rel (%p228) target = $region36
        $region35: #{tpu_custom_call.1} parent=31 // pred_region
          %231 = dma.done %s224, 128
        $region36: #{tpu_custom_call.1} parent=31 // pred_fallthru
          _
        %s232 = sand.u32 %s23, 1
        %s233 = scalar_lea.sflag [#allocation8], %s232
        %s234 = sand.u32 %s75, 1
        %s235 = smul.addr %s234, 8
        %s236 = scalar_lea.vmem [#allocation7], %s235
        // Predicated region
        $region37: #{tpu_custom_call.1} parent=31 // pred_check
          %p237 = pneg %p88
        $region38: #{tpu_custom_call.1} parent=31 // pred_check_branch
          %239 = sbr.rel (%p237) target = $region40
        $region39: #{tpu_custom_call.1} parent=31 // pred_region
          %240 = dma.done %s233, 128
        $region40: #{tpu_custom_call.1} parent=31 // pred_fallthru
          _
        // Predicated region
        $region41: #{tpu_custom_call.1} parent=31 // pred_check
          %p241 = pneg %p109
        $region42: #{tpu_custom_call.1} parent=31 // pred_check_branch
          %243 = sbr.rel (%p241) target = $region44
        $region43: #{tpu_custom_call.1} parent=31 // pred_region
          %244 = dma.done [#allocation8], 4096
        $region44: #{tpu_custom_call.1} parent=31 // pred_fallthru
          _
        %s245 = sand.u32 %s45, 1
        %s246 = scalar_lea.sflag [#allocation5], %s245
        %s247 = sand.u32 %s45, 1
        %s248 = smul.addr %s247, 8
        %s249 = scalar_lea.vmem [#allocation4], %s248
        %p250 = pneg %p58
        %p251 = pneg %p55
        %s252 = sand.u32 %s23, 1
        %s253 = scalar_lea.sflag [#allocation8], %s252
        %s254 = sand.u32 %s75, 1
        %s255 = smul.addr %s254, 8
        %s256 = scalar_lea.vmem [#allocation7], %s255
        %p257 = pneg %p88
        %p258 = pneg %p85
        %p259 = pneg %p109
        %p260 = pneg %p106
        %p261 = pneg %p137
        %p262 = pneg %p134
        %s263 = sand.u32 %s124, 1
        %s264 = scalar_lea.sflag [#allocation6], %s263
        %s265 = sand.u32 %s124, 1
        %s266 = smul.addr %s265, 16
        %s267 = scalar_lea.vmem [#allocation10], %s266
        %s268 = smul.u32 2, %s28
        %s269 = sadd.s32 %s28, 1
        %s270 = smul.u32 2, %s269
        %s271 = smul.u32 2, %s28
        %s275 = smul.u32 %s28, 16
        %v276 = vld [vmem:[%s227] sm:$0xf]
        %v277 = vld [vmem:[%s227 + $0x4] sm:$0xf]
        %v280 = vunpack.c.l.b16 %v276
        %v281 = vunpack.c.l.b16 %v277
        %v282 = vpack.c.b16 %v281, %v280
        %284 = vst [vmem:[#allocation2] sm:$0xff] %v282
        %v285 = vld [vmem:[%s236] sm:$0xf]
        %v286 = vld [vmem:[%s236 + $0x4] sm:$0xf]
        %v289 = vunpack.c.l.b16 %v285
        %v290 = vunpack.c.l.b16 %v286
        %v291 = vpack.c.b16 %v290, %v289
        %293 = vst [vmem:[#allocation2 + $0x8] sm:$0xff] %v291
        %v294 = vlaneseq
        %v295 = vshrl.u32 %v294, 7
        %v296 = vadd.s32 %v295, 8
        %v297 = vadd.s32 %v295, 16
        %s298 = ssub.s32 %s275, 1
        %v299 = vstv %s298
        %v300 = vadd.s32 %v295, %v299
        %v301 = vadd.s32 %v296, %v299
        %v302 = vadd.s32 %v297, %v299
        %vm303 = vcmp.ge.s32.totalorder %v300, 0
        %vm304 = vcmp.ge.s32.totalorder %v301, 0
        %vm305 = vcmp.ge.s32.totalorder %v302, 0
        %vm306 = vcmp.lt.s32.totalorder %v300, 7
        %vm307 = vcmp.lt.s32.totalorder %v301, 7
        %vm308 = vcmp.lt.s32.totalorder %v302, 7
        %vm309 = vmand %vm303, %vm306
        %vm310 = vmand %vm304, %vm307
        %vm311 = vmand %vm305, %vm308
        %v312 = vld [vmem:[#allocation2] sm:$0xff]
        %v313 = vld [vmem:[#allocation2 + $0x8] sm:$0xf]
        %v314 = vsel %vm309, 1, 0
        %v315 = vsel %vm310, 1, 0
        %v316 = vsel %vm311, 1, 0
        %vm317 = vcmp.eq.s32.totalorder %v314, 1
        %vm318 = vcmp.eq.s32.totalorder %v315, 1
        %vm319 = vcmp.eq.s32.totalorder %v316, 1
        %vm320 = vmpackc.low %vm317, %vm317
        %vm321 = vmpackc.low %vm318, %vm318
        %vm322 = vmpackc.low %vm319, %vm319
        %v323 = vsel %vm320, 65537, 0
        %v324 = vsel %vm321, 65537, 0
        %v325 = vsel %vm322, 65537, 0
        %v326 = vunpack.c.l.b16 %v323
        %v327 = vunpack.c.l.b16 %v324
        %v328 = vunpack.c.l.b16 %v325
        %v329 = vpack.c.b16 %v327, %v326
        %v330 = vpack.c.b16 %v328, %v328
        %vm331 = vcmp.ne.s16.totalorder %v329, 0
        %vm332 = vcmp.ne.s16.totalorder %v330, 0
        %v333 = vsel %vm331, %v312, 0
        %v334 = vsel %vm332, %v313, 0
        %v337 = vunpack.c.l.b16 %v333
        %v338 = vunpack.c.h.b16 %v333
        %v339 = vunpack.c.l.b16 %v334
        %v340 = vpack.c.b16 %v337, %v337
        %v341 = vpack.c.b16 %v338, %v338
        %v342 = vpack.c.b16 %v339, %v339
        %346 = vst [vmem:[#allocation3] sm:$0xf] %v340
        %347 = vst [vmem:[#allocation3 + $0x8] sm:$0xf] %v341
        %348 = vst [vmem:[#allocation3 + $0x10] sm:$0xf] %v342
        %v349 = vld [vmem:[#allocation2] sm:$0xff]
        %v350 = vld [vmem:[#allocation2 + $0x8] sm:$0x1f]
        %vm351 = vsmask.f32 256
        %v353 = vshrl.u32 %v329, 16
        %v355 = vrot.slane %v353, 7
        %v356 = vshll.u32 %v329, 16
        %v358 = vor.u32 %v355, %v356
        %v360 = vshrl.u32 %v330, 16
        %v362 = vrot.slane %v360, 7
        %v363 = vshll.u32 %v330, 16
        %v365 = vor.u32 %v362, %v363
        %v366 = vsel %vm351, %v355, %v365
        %vm367 = vcmp.ne.s16.totalorder %v358, 0
        %vm368 = vcmp.ne.s16.totalorder %v366, 0
        %v369 = vsel %vm367, %v349, 0
        %v370 = vsel %vm368, %v350, 0
        %v373 = vunpack.c.l.b16 %v369
        %v374 = vunpack.c.h.b16 %v369
        %v375 = vunpack.c.l.b16 %v370
        %v376 = vunpack.c.h.b16 %v370
        %v377 = vpack.c.b16 %v373, %v373
        %v378 = vpack.c.b16 %v374, %v374
        %v379 = vpack.c.b16 %v375, %v375
        %v380 = vpack.c.b16 %v376, %v376
        %vm381 = vsmask.f32 3328
        %vm382 = vsmask.f32 7440
        %vm383 = vmor %vm381, %vm382
        %v385 = vshrl.u32 %v377, 16
        %v387 = vrot.slane %v385, 4
        %v388 = vshll.u32 %v377, 16
        %v390 = vrot.slane %v388, 5
        %v391 = vor.u32 %v387, %v390
        %v392 = vrot.slane %v391, 4
        %v394 = vshll.u32 %v378, 16
        %v396 = vrot.slane %v394, 5
        %v397 = vsel %vm383, %v392, %v396
        %v398 = vshrl.u32 %v378, 16
        %v400 = vrot.slane %v398, 4
        %v401 = vor.u32 %v400, %v396
        %v402 = vrot.slane %v401, 4
        %v404 = vshll.u32 %v379, 16
        %v406 = vrot.slane %v404, 5
        %v407 = vsel %vm383, %v402, %v406
        %v408 = vshrl.u32 %v379, 16
        %v410 = vrot.slane %v408, 4
        %v411 = vor.u32 %v410, %v406
        %v412 = vrot.slane %v411, 4
        %v414 = vshll.u32 %v380, 16
        %v416 = vrot.slane %v414, 5
        %v417 = vsel %vm383, %v412, %v416
        %421 = vst [vmem:[#allocation3 + $0x4] sm:$0xf] %v397
        %422 = vst [vmem:[#allocation3 + $0xc] sm:$0xf] %v407
        %423 = vst [vmem:[#allocation3 + $0x14] sm:$0xf] %v417
        %v424 = vld [vmem:[#allocation3] sm:$0xff]
        %v425 = vld [vmem:[#allocation3 + $0x8] sm:$0xff]
        %v426 = vld [vmem:[#allocation3 + $0x10] sm:$0xff]
        %v427 = vld [vmem:[#allocation9] sm:$0xff]
        %v428 = vld [vmem:[#allocation9 + $0x8] sm:$0xff]
        %v429 = vld [vmem:[#allocation9 + $0x10] sm:$0xff]
        %v430 = vld [vmem:[#allocation9 + $0x18] sm:$0xff]
        %v431 = vld [vmem:[#allocation9 + $0x20] sm:$0xff]
        %v432 = vld [vmem:[#allocation9 + $0x28] sm:$0xff]
        %v433 = vld [vmem:[#allocation9 + $0x30] sm:$0xff]
        %v434 = vld [vmem:[#allocation9 + $0x38] sm:$0xff]
        %v435 = vld [vmem:[#allocation9 + $0x40] sm:$0xff]
        %v436 = vld [vmem:[#allocation9 + $0x48] sm:$0xff]
        %v437 = vld [vmem:[#allocation9 + $0x50] sm:$0xff]
        %v438 = vld [vmem:[#allocation9 + $0x58] sm:$0xff]
        %v439 = vld [vmem:[#allocation9 + $0x60] sm:$0xff]
        %v440 = vld [vmem:[#allocation9 + $0x68] sm:$0xff]
        %v441 = vld [vmem:[#allocation9 + $0x70] sm:$0xff]
        %v442 = vld [vmem:[#allocation9 + $0x78] sm:$0xff]
        %v443 = vld [vmem:[#allocation9 + $0x80] sm:$0xff]
        %v444 = vld [vmem:[#allocation9 + $0x88] sm:$0xff]
        %v445 = vld [vmem:[#allocation9 + $0x90] sm:$0xff]
        %v446 = vld [vmem:[#allocation9 + $0x98] sm:$0xff]
        %v447 = vld [vmem:[#allocation9 + $0xa0] sm:$0xff]
        %v448 = vld [vmem:[#allocation9 + $0xa8] sm:$0xff]
        %v449 = vld [vmem:[#allocation9 + $0xb0] sm:$0xff]
        %v450 = vld [vmem:[#allocation9 + $0xb8] sm:$0xff]
        %v451 = vld [vmem:[#allocation9 + $0xc0] sm:$0xff]
        %v452 = vld [vmem:[#allocation9 + $0xc8] sm:$0xff]
        %v453 = vld [vmem:[#allocation9 + $0xd0] sm:$0xff]
        %v454 = vld [vmem:[#allocation9 + $0xd8] sm:$0xff]
        %v455 = vld [vmem:[#allocation9 + $0xe0] sm:$0xff]
        %v456 = vld [vmem:[#allocation9 + $0xe8] sm:$0xff]
        %v457 = vld [vmem:[#allocation9 + $0xf0] sm:$0xff]
        %v458 = vld [vmem:[#allocation9 + $0xf8] sm:$0xff]
        %v462 = vunpack.c.l.b16 %v424
        %v463 = vunpack.c.h.b16 %v424
        %v464 = vunpack.c.l.b16 %v425
        %v465 = vunpack.c.h.b16 %v425
        %v466 = vunpack.c.l.b16 %v426
        %v467 = vunpack.c.h.b16 %v426
        %v468 = vpack.c.b16 %v464, %v462
        %v469 = vpack.c.b16 %v465, %v463
        %v470 = vpack.c.b16 %v466, %v466
        %v471 = vpack.c.b16 %v467, %v467
        %v508 = vunpack.c.l.b16 %v427
        %v509 = vunpack.c.h.b16 %v427
        %v510 = vunpack.c.l.b16 %v428
        %v511 = vunpack.c.h.b16 %v428
        %v512 = vunpack.c.l.b16 %v429
        %v513 = vunpack.c.h.b16 %v429
        %v514 = vunpack.c.l.b16 %v430
        %v515 = vunpack.c.h.b16 %v430
        %v516 = vunpack.c.l.b16 %v431
        %v517 = vunpack.c.h.b16 %v431
        %v518 = vunpack.c.l.b16 %v432
        %v519 = vunpack.c.h.b16 %v432
        %v520 = vunpack.c.l.b16 %v433
        %v521 = vunpack.c.h.b16 %v433
        %v522 = vunpack.c.l.b16 %v434
        %v523 = vunpack.c.h.b16 %v434
        %v524 = vunpack.c.l.b16 %v435
        %v525 = vunpack.c.h.b16 %v435
        %v526 = vunpack.c.l.b16 %v436
        %v527 = vunpack.c.h.b16 %v436
        %v528 = vunpack.c.l.b16 %v437
        %v529 = vunpack.c.h.b16 %v437
        %v530 = vunpack.c.l.b16 %v438
        %v531 = vunpack.c.h.b16 %v438
        %v532 = vunpack.c.l.b16 %v439
        %v533 = vunpack.c.h.b16 %v439
        %v534 = vunpack.c.l.b16 %v440
        %v535 = vunpack.c.h.b16 %v440
        %v536 = vunpack.c.l.b16 %v441
        %v537 = vunpack.c.h.b16 %v441
        %v538 = vunpack.c.l.b16 %v442
        %v539 = vunpack.c.h.b16 %v442
        %v540 = vunpack.c.l.b16 %v443
        %v541 = vunpack.c.h.b16 %v443
        %v542 = vunpack.c.l.b16 %v444
        %v543 = vunpack.c.h.b16 %v444
        %v544 = vunpack.c.l.b16 %v445
        %v545 = vunpack.c.h.b16 %v445
        %v546 = vunpack.c.l.b16 %v446
        %v547 = vunpack.c.h.b16 %v446
        %v548 = vunpack.c.l.b16 %v447
        %v549 = vunpack.c.h.b16 %v447
        %v550 = vunpack.c.l.b16 %v448
        %v551 = vunpack.c.h.b16 %v448
        %v552 = vunpack.c.l.b16 %v449
        %v553 = vunpack.c.h.b16 %v449
        %v554 = vunpack.c.l.b16 %v450
        %v555 = vunpack.c.h.b16 %v450
        %v556 = vunpack.c.l.b16 %v451
        %v557 = vunpack.c.h.b16 %v451
        %v558 = vunpack.c.l.b16 %v452
        %v559 = vunpack.c.h.b16 %v452
        %v560 = vunpack.c.l.b16 %v453
        %v561 = vunpack.c.h.b16 %v453
        %v562 = vunpack.c.l.b16 %v454
        %v563 = vunpack.c.h.b16 %v454
        %v564 = vunpack.c.l.b16 %v455
        %v565 = vunpack.c.h.b16 %v455
        %v566 = vunpack.c.l.b16 %v456
        %v567 = vunpack.c.h.b16 %v456
        %v568 = vunpack.c.l.b16 %v457
        %v569 = vunpack.c.h.b16 %v457
        %v570 = vunpack.c.l.b16 %v458
        %v571 = vunpack.c.h.b16 %v458
        %v572 = vpack.c.b16 %v510, %v508
        %v573 = vpack.c.b16 %v511, %v509
        %v574 = vpack.c.b16 %v514, %v512
        %v575 = vpack.c.b16 %v515, %v513
        %v576 = vpack.c.b16 %v518, %v516
        %v577 = vpack.c.b16 %v519, %v517
        %v578 = vpack.c.b16 %v522, %v520
        %v579 = vpack.c.b16 %v523, %v521
        %v580 = vpack.c.b16 %v526, %v524
        %v581 = vpack.c.b16 %v527, %v525
        %v582 = vpack.c.b16 %v530, %v528
        %v583 = vpack.c.b16 %v531, %v529
        %v584 = vpack.c.b16 %v534, %v532
        %v585 = vpack.c.b16 %v535, %v533
        %v586 = vpack.c.b16 %v538, %v536
        %v587 = vpack.c.b16 %v539, %v537
        %v588 = vpack.c.b16 %v542, %v540
        %v589 = vpack.c.b16 %v543, %v541
        %v590 = vpack.c.b16 %v546, %v544
        %v591 = vpack.c.b16 %v547, %v545
        %v592 = vpack.c.b16 %v550, %v548
        %v593 = vpack.c.b16 %v551, %v549
        %v594 = vpack.c.b16 %v554, %v552
        %v595 = vpack.c.b16 %v555, %v553
        %v596 = vpack.c.b16 %v558, %v556
        %v597 = vpack.c.b16 %v559, %v557
        %v598 = vpack.c.b16 %v562, %v560
        %v599 = vpack.c.b16 %v563, %v561
        %v600 = vpack.c.b16 %v566, %v564
        %v601 = vpack.c.b16 %v567, %v565
        %v602 = vpack.c.b16 %v570, %v568
        %v603 = vpack.c.b16 %v571, %v569
        %636 = vmatprep.subr.bf16.mxu0 %v573
        %637 = vmatpush1.bf16.msra.mxu0 %v572
        %638 = vmatprep.subr.bf16.mxu0 %v575
        %639 = vmatpush1.bf16.msra.mxu0 %v574
        %640 = vmatprep.subr.bf16.mxu0 %v577
        %641 = vmatpush1.bf16.msra.mxu0 %v576
        %642 = vmatprep.subr.bf16.mxu0 %v579
        %643 = vmatpush1.bf16.msra.mxu0 %v578
        %644 = vmatprep.subr.bf16.mxu0 %v581
        %645 = vmatpush1.bf16.msra.mxu0 %v580
        %646 = vmatprep.subr.bf16.mxu0 %v583
        %647 = vmatpush1.bf16.msra.mxu0 %v582
        %648 = vmatprep.subr.bf16.mxu0 %v585
        %649 = vmatpush1.bf16.msra.mxu0 %v584
        %650 = vmatprep.subr.bf16.mxu0 %v587
        %651 = vmatpush1.bf16.msra.mxu0 %v586
        %652 = vmatprep.subr.bf16.mxu0 %v589
        %653 = vmatpush1.bf16.msra.mxu0 %v588
        %654 = vmatprep.subr.bf16.mxu0 %v591
        %655 = vmatpush1.bf16.msra.mxu0 %v590
        %656 = vmatprep.subr.bf16.mxu0 %v593
        %657 = vmatpush1.bf16.msra.mxu0 %v592
        %658 = vmatprep.subr.bf16.mxu0 %v595
        %659 = vmatpush1.bf16.msra.mxu0 %v594
        %660 = vmatprep.subr.bf16.mxu0 %v597
        %661 = vmatpush1.bf16.msra.mxu0 %v596
        %662 = vmatprep.subr.bf16.mxu0 %v599
        %663 = vmatpush1.bf16.msra.mxu0 %v598
        %664 = vmatprep.subr.bf16.mxu0 %v601
        %665 = vmatpush1.bf16.msra.mxu0 %v600
        %666 = vmatprep.subr.bf16.mxu0 %v603
        %667 = vmatpush1.bf16.msra.mxu0 %v602
        %668 = vmatprep.mubr.bf16.mxu0 %v469
        %669 = vmatmul.mubr.bf16.gmra.mrb[0].mxu0 %v468
        %v670 = vpop.f32.mrb[0].mxu0
        %v671 = vadd.f32 0.0, %v670
        %v672 = vpop.f32.mrb[0].mxu0
        %v673 = vadd.f32 0.0, %v672
        %v674 = vpop.f32.mrb[0].mxu0
        %v675 = vadd.f32 0.0, %v674
        %v676 = vpop.f32.mrb[0].mxu0
        %v677 = vadd.f32 0.0, %v676
        %678 = vmatprep.mubr.bf16.mxu0 %v471
        %679 = vmatmul.mubr.bf16.gmra.mrb[0].mxu0 %v470
        %v680 = vpop.f32.mrb[0].mxu0
        %v681 = vadd.f32 0.0, %v680
        %v682 = vpop.f32.mrb[0].mxu0
        %v683 = vpop.f32.mrb[0].mxu0
        %v684 = vpop.f32.mrb[0].mxu0
        %685 = vdwg.mxu0
        %vm688 = vcmask 1040384
        %v689 = vrot.slane %v673, 7
        %v690 = vrot.slane %v677, 7
        %v691 = vsel %vm688, %v689, %v690
        %v695 = vadd.f32 %v671, %v689
        %v696 = vadd.f32 %v675, %v691
        %v697 = vadd.f32 %v681, %v690
        %698 = vst [vmem:[%s267 - $0x1] sm:$0xfe] %v695
        %699 = vst [vmem:[%s267 + $0x7] sm:$0xff] %v696
        %700 = vst [vmem:[%s267 + $0xf] sm:$0x1] %v697
        %s701 = sand.u32 %s124, 1
        %s702 = scalar_lea.sflag [#allocation6], %s701
        %s703 = sand.u32 %s124, 1
        %s704 = smul.addr %s703, 16
        %s705 = scalar_lea.vmem [#allocation10], %s704
        // Predicated region
        $region45: #{tpu_custom_call.1} parent=31 // pred_check
          %p706 = pneg %p134
        $region46: #{tpu_custom_call.1} parent=31 // pred_check_branch
          %708 = sbr.rel (%p706) target = $region48
        $region47: #{tpu_custom_call.1} parent=31 // pred_region
          %s709 = smul.u32 2, %s28
          %s711 = ssub.s32 256, 256
          %712 = vsyncadd %s702, %s711
          %s713 = smul.addr %s27, 2
          %s714 = sadd.s32 %s709, %s713
          %s715 = smul.addr %s714, 128
          %s716 = scalar_lea.hbm %s3, %s715
          %s717 = sshll.u32 %s705, 4
          %s718 = int_to_ptr.vmem [resolvable:$true] %s717
          %723 = dma.vmem_to_hbm [thread:$0]  %s718, 256, %s716, %s702, 128, 128, 8
        $region48: #{tpu_custom_call.1} parent=31 // pred_fallthru
          _
      $region32: #{tpu_custom_call.1} parent=5 // pred_fallthru
        _
      %p724 = scmp.le.s32.totalorder 2, %s18
      // Predicated region
      $region49: #{tpu_custom_call.1} parent=5 // pred_check
        %p725 = pneg %p724
      $region50: #{tpu_custom_call.1} parent=5 // pred_check_branch
        %727 = sbr.rel (%p725) target = $region52
      $region51: #{tpu_custom_call.1} parent=5 // pred_region
        %s728 = ssub.s32 %s18, 2
        // Predicated region
        $region53: #{tpu_custom_call.1} parent=51 // pred_check
          %p729 = pneg %p140
        $region54: #{tpu_custom_call.1} parent=51 // pred_check_branch
          %731 = sbr.rel (%p729) target = $region56
        $region55: #{tpu_custom_call.1} parent=51 // pred_region
          %s732 = sand.u32 %s125, 1
          %s733 = scalar_lea.sflag [#allocation6], %s732
          %s734 = sand.u32 %s125, 1
          %s735 = smul.addr %s734, 16
          %s736 = scalar_lea.vmem [#allocation10], %s735
          %737 = dma.done %s733, 256
        $region56: #{tpu_custom_call.1} parent=51 // pred_fallthru
          _
      $region52: #{tpu_custom_call.1} parent=5 // pred_fallthru
        _
    $region6: #{tpu_custom_call.1} parent=1 // loop_footer
      %s22 = sadd.s32 1, %s18
    $region7: #{tpu_custom_call.1} parent=1 // loop_footer_branch
      %17 = sbr.rel target = $region3
    $region8: #{tpu_custom_call.1} parent=1 // loop_exit
      _
    %738 = vsyncpa [#allocation5], 1
    %s739 = scalar_lea.sflag [#allocation5], 1
    %740 = vsyncpa %s739, 1
    %741 = vsyncpa [#allocation8], 1
    %s742 = scalar_lea.sflag [#allocation8], 1
    %743 = vsyncpa %s742, 1
    %744 = vsyncpa [#allocation6], 1
    %s745 = scalar_lea.sflag [#allocation6], 1
    %746 = vsyncpa %s745, 1

</llo_original>
